<compile_context>
chip_gen: v7x
topology: tpu7x:2x2x1
jax: 0.10.0
libtpu: 0.0.40
codegen_flags: <defaults>
</compile_context>

<pallas_src>
import math

import jax
import jax.numpy as jnp
from jax.experimental import pallas as pl
from jax.experimental.pallas import tpu as pltpu


def strnn_kernel(x_ref, wflat_ref, sel_ref, wh_ref, out_ref, projr_ref):
    """Per-batch-block STRNN forward.

    Block shapes:
      x_ref:     (1, S, I)        f32   inputs for this batch row
      wflat_ref: (I, C_pad*H)     f32   [W_time | W_dist | 0-pad], col = c*H + h
      sel_ref:   (1, S, C_pad*S)  bf16  0/0.5 select weights,      col = c*S + j
      wh_ref:    (H, H)           f32
      out_ref:   (1, S, H)        f32
      projr_ref: (C_pad*S, H)     f32   VMEM scratch,              row = c*S + j
    """
    S = x_ref.shape[1]
    H = wh_ref.shape[0]
    c_pad = wflat_ref.shape[1] // H

    # ---- Stage 1: fused projection, ONE wide lane-dense MXU matmul --------
    proj = jnp.dot(x_ref[0], wflat_ref[...],
                   preferred_element_type=jnp.float32)          # (S, C_pad*H)

    # ---- Relayout: slot axis from lanes to rows ----------------------------
    # C_pad static slice copies into a VMEM scratch.  This is the same data
    # movement a reshape (S, C_pad*H) -> (C_pad*S, H) would perform, but uses
    # only static slices + ref stores (guaranteed lowering).  It sits off the
    # serial path and overlaps with MXU work.
    for c in range(c_pad):
        projr_ref[c * S:(c + 1) * S, :] = proj[:, c * H:(c + 1) * H]

    # ---- Stage 2: ONE fused matmul over (slot, context) -------------------
    # sel folds one-hot slot select * context mask * causal mask * 0.5 (built
    # wrapper-side; exact in bf16).  Contraction depth = C_pad*S.
    sel = sel_ref[0].astype(jnp.float32)                        # (S, C_pad*S)
    xc = jnp.dot(sel, projr_ref[...],
                 preferred_element_type=jnp.float32)            # (S, H)

    # ---- Stage 3: serial sigmoid recurrence (fully unrolled) ---------------
    # TODO(synk): for large S/H, pin wh in the MXU weight registers across the
    # unrolled steps (pltpu.matmul_push_rhs / matmul_acc_lhs / matmul_pop)
    # instead of relying on Mosaic not re-pushing the (H,H) weight each step.
    wh = wh_ref[...]
    h = jnp.zeros((1, H), jnp.float32)
    for i in range(S):
        h = jax.nn.sigmoid(
            xc[i:i + 1, :] + jnp.dot(h, wh, preferred_element_type=jnp.float32))
        out_ref[:, i, :] = h   # VMEM store; HBM writeback is one DMA per block


def _padded_num_slots(two_k, hidden):
    """Smallest C_pad >= 2K such that C_pad * H is a multiple of 128."""
    step = 128 // math.gcd(128, hidden)
    return ((two_k + step - 1) // step) * step


def _build_fused_weights(time_weights, dist_weights, c_pad):
    """(K,I,H) x2 -> (I, C_pad*H), column order c*H + h, time slots first,
    zero columns for the padded slots."""
    K, I, H = time_weights.shape
    w_all = jnp.concatenate(
        [time_weights.astype(jnp.float32),
         dist_weights.astype(jnp.float32),
         jnp.zeros((c_pad - 2 * K, I, H), jnp.float32)], axis=0)   # (C_pad,I,H)
    return jnp.transpose(w_all, (1, 0, 2)).reshape(I, c_pad * H)


def _build_select_weights(time_contexts, dist_contexts, context_masks,
                          num_k, c_pad):
    """Fold one-hot slot select, context mask, causal mask and the 0.5 factor
    into a (B, S, C_pad*S_ctx) bf16 tensor, column order c*S_ctx + j (matches
    the scratch row order used by the kernel's fused Stage-2 matmul)."""
    B, S, S_ctx = time_contexts.shape
    causal = (jnp.arange(S_ctx)[None, :] <= jnp.arange(S)[:, None])
    base = (0.5 * context_masks.astype(jnp.float32)
            * causal.astype(jnp.float32)[None])                     # (B,S,S_ctx)
    slots = jnp.arange(num_k, dtype=jnp.int32)[:, None, None, None]
    t_oh = (time_contexts.astype(jnp.int32)[None] == slots).astype(jnp.float32)
    d_oh = (dist_contexts.astype(jnp.int32)[None] == slots).astype(jnp.float32)
    pad = jnp.zeros((c_pad - 2 * num_k, B, S, S_ctx), jnp.float32)
    sel = jnp.concatenate([t_oh, d_oh, pad], axis=0) * base[None]   # (C_pad,B,S,S_ctx)
    sel = jnp.transpose(sel, (1, 2, 0, 3)).reshape(B, S, c_pad * S_ctx)
    return sel.astype(jnp.bfloat16)        # values {0, 0.5}: exact in bf16


def strnn_forward(x_contexts, time_contexts, dist_contexts, context_masks,
                  time_weights, dist_weights, hidden_weights):
    B, S, I = x_contexts.shape
    H = hidden_weights.shape[0]
    K = time_weights.shape[0]                       # num_slots + 1
    # Review correctness concern: the kernel assumes context length == S.
    assert time_contexts.shape == (B, S, S)
    assert dist_contexts.shape == (B, S, S)
    assert context_masks.shape == (B, S, S)

    c_pad = _padded_num_slots(2 * K, H)             # lane-dense C_pad*H

    x = x_contexts.astype(jnp.float32)                                # (B,S,I)
    w_flat = _build_fused_weights(time_weights, dist_weights, c_pad)  # (I,Cp*H)
    sel = _build_select_weights(time_contexts, dist_contexts,
                                context_masks, K, c_pad)              # (B,S,Cp*S) bf16
    wh = hidden_weights.astype(jnp.float32)

    outputs = pl.pallas_call(
        strnn_kernel,
        out_shape=jax.ShapeDtypeStruct((B, S, H), jnp.float32),
        grid_spec=pltpu.PrefetchScalarGridSpec(
            num_scalar_prefetch=0,
            grid=(B,),                                  # batch-parallel grid
            in_specs=[
                pl.BlockSpec((1, S, I), lambda b: (b, 0, 0)),
                pl.BlockSpec((I, c_pad * H), lambda b: (0, 0)),
                pl.BlockSpec((1, S, c_pad * S), lambda b: (b, 0, 0)),
                pl.BlockSpec((H, H), lambda b: (0, 0)),
            ],
            out_specs=pl.BlockSpec((1, S, H), lambda b: (b, 0, 0)),
            scratch_shapes=[pltpu.VMEM((c_pad * S, H), jnp.float32)],
        ),
        compiler_params=pltpu.CompilerParams(
            dimension_semantics=("parallel",),          # megacore / 2-TC split
            # Explicit scoped-VMEM budget (review item); at production shapes
            # size the batch tile so (x + sel + proj + scratch) * 2 buffers
            # stays under ~half of 64 MiB on v7x / 128 MiB on v5e/v6e.
            vmem_limit_bytes=32 * 1024 * 1024,
        ),
    )(x, w_flat, sel, wh)

    h_n = outputs[:, -1, :][None]                    # (1, B, H)
    return outputs, h_n


def strnn_reference(x, tidx, didx, mask, wt, wd, wh):
    """Pure-JAX mirror of the PyTorch forward (for correctness checking)."""
    B, S, I = x.shape
    H = wh.shape[0]
    h = jnp.zeros((B, H), jnp.float32)
    outs = []
    for i in range(S):
        tw = wt[tidx[:, i, :i + 1]]                       # (B, i+1, I, H)
        dw = wd[didx[:, i, :i + 1]]
        xc1 = jnp.einsum('bji,bjih->bjh', x[:, :i + 1], dw)
        xc2 = jnp.einsum('bji,bjih->bjh', x[:, :i + 1], tw)
        xc = 0.5 * xc1 + 0.5 * xc2
        xc = jnp.where(mask[:, i, :i + 1, None], xc, 0.0).sum(axis=1)
        h = jax.nn.sigmoid(xc + h @ wh)
        outs.append(h)
    return jnp.stack(outs, axis=1), h[None]


def init_params(key, input_size, hidden_size, num_slots):
    """Deterministic xavier-normal init matching STRNNCell.__init__ shapes."""
    K = num_slots + 1
    k1, k2, k3 = jax.random.split(key, 3)
    std_w = (2.0 / (input_size + hidden_size)) ** 0.5
    std_h = (2.0 / (hidden_size + hidden_size)) ** 0.5
    time_w = jax.random.normal(k1, (K, input_size, hidden_size), jnp.float32) * std_w
    dist_w = jax.random.normal(k2, (K, input_size, hidden_size), jnp.float32) * std_w
    hid_w = jax.random.normal(k3, (hidden_size, hidden_size), jnp.float32) * std_h
    return time_w, dist_w, hid_w


if __name__ == "__main__":
    B, S, I, H = 2, 8, 8, 32
    num_slots = 4            # slot indices in [0, num_slots]
    inter_size = 16          # unused in the forward pass (kept for parity)

    key = jax.random.PRNGKey(0)
    kx, kt, kd, km, kp = jax.random.split(key, 5)
    x_contexts = jax.random.normal(kx, (B, S, I), jnp.float32)
    time_contexts = jax.random.randint(kt, (B, S, S), 0, num_slots + 1)
    dist_contexts = jax.random.randint(kd, (B, S, S), 0, num_slots + 1)
    context_masks = jax.random.bernoulli(km, 0.7, (B, S, S))

    wt, wd, wh = init_params(kp, I, H, num_slots)

    outputs, h_n = strnn_forward(x_contexts, time_contexts, dist_contexts,
                                 context_masks, wt, wd, wh)
    jax.block_until_ready((outputs, h_n))

    ref_out, ref_h = strnn_reference(x_contexts, time_contexts, dist_contexts,
                                     context_masks, wt, wd, wh)
    assert outputs.shape == (B, S, H) and h_n.shape == (1, B, H)
    assert jnp.allclose(outputs, ref_out, atol=1e-5, rtol=1e-5)
    assert jnp.allclose(h_n, ref_h, atol=1e-5, rtol=1e-5)

    print("KERNEL_OK")
</pallas_src>

<mosaic_0001>
module attributes {stable_mosaic.version = 11 : i64} {
  func.func @strnn_kernel(%arg0: i32, %arg1: memref<1x8x8xf32, #tpu.memory_space<vmem>>, %arg2: memref<8x384xf32, #tpu.memory_space<vmem>>, %arg3: memref<1x8x96xbf16, #tpu.memory_space<vmem>>, %arg4: memref<32x32xf32, #tpu.memory_space<vmem>>, %arg5: memref<1x8x32xf32, #tpu.memory_space<vmem>>, %arg6: memref<96x32xf32, #tpu.memory_space<vmem>>) attributes {dimension_semantics = [#tpu.dimension_semantics<parallel>], iteration_bounds = array<i64: 2>, scalar_prefetch = 0 : i64, scratch_operands = 1 : i64, tpu.core_type = #tpu.core_type<tc>, window_params = [{transform_indices = @transform_0, window_bounds = array<i64: 1, 8, 8>}, {pipeline_mode = #tpu.pipeline_mode<synchronous>, transform_indices = @transform_1, window_bounds = array<i64: 8, 384>}, {transform_indices = @transform_2, window_bounds = array<i64: 1, 8, 96>}, {pipeline_mode = #tpu.pipeline_mode<synchronous>, transform_indices = @transform_3, window_bounds = array<i64: 32, 32>}, {transform_indices = @transform_4, window_bounds = array<i64: 1, 8, 32>}]} {
    %c0 = arith.constant 0 : index
    %c0_0 = arith.constant 0 : index
    %c0_1 = arith.constant 0 : index
    %0 = vector.load %arg1[%c0, %c0_0, %c0_1] : memref<1x8x8xf32, #tpu.memory_space<vmem>>, vector<1x8x8xf32>
    %1 = vector.shape_cast %0 : vector<1x8x8xf32> to vector<8x8xf32>
    %c0_2 = arith.constant 0 : index
    %c0_3 = arith.constant 0 : index
    %2 = vector.load %arg2[%c0_2, %c0_3] : memref<8x384xf32, #tpu.memory_space<vmem>>, vector<8x384xf32>
    %cst = arith.constant dense<0.000000e+00> : vector<8x384xf32>
    %3 = tpu.matmul %1, %2, %cst {dimension_numbers = #tpu.dot_dimension_numbers<[1], [0], [0], [1], [0, 0, 1, 1], [], []>} : vector<8x8xf32>, vector<8x384xf32>, vector<8x384xf32> -> vector<8x384xf32>
    %4 = vector.extract_strided_slice %3 {offsets = [0, 0], sizes = [8, 32], strides = [1, 1]} : vector<8x384xf32> to vector<8x32xf32>
    %c0_4 = arith.constant 0 : index
    %c0_5 = arith.constant 0 : index
    %5 = vector.load %arg6[%c0_4, %c0_5] : memref<96x32xf32, #tpu.memory_space<vmem>>, vector<8x32xf32>
    tpu.vector_store %arg6[%c0_4, %c0_5], %4 {strides = array<i32>} : memref<96x32xf32, #tpu.memory_space<vmem>>, vector<8x32xf32>,
    %6 = vector.extract_strided_slice %3 {offsets = [0, 32], sizes = [8, 32], strides = [1, 1]} : vector<8x384xf32> to vector<8x32xf32>
    %c8 = arith.constant 8 : index
    %c0_6 = arith.constant 0 : index
    %7 = vector.load %arg6[%c8, %c0_6] : memref<96x32xf32, #tpu.memory_space<vmem>>, vector<8x32xf32>
    tpu.vector_store %arg6[%c8, %c0_6], %6 {strides = array<i32>} : memref<96x32xf32, #tpu.memory_space<vmem>>, vector<8x32xf32>,
    %8 = vector.extract_strided_slice %3 {offsets = [0, 64], sizes = [8, 32], strides = [1, 1]} : vector<8x384xf32> to vector<8x32xf32>
    %c16 = arith.constant 16 : index
    %c0_7 = arith.constant 0 : index
    %9 = vector.load %arg6[%c16, %c0_7] : memref<96x32xf32, #tpu.memory_space<vmem>>, vector<8x32xf32>
    tpu.vector_store %arg6[%c16, %c0_7], %8 {strides = array<i32>} : memref<96x32xf32, #tpu.memory_space<vmem>>, vector<8x32xf32>,
    %10 = vector.extract_strided_slice %3 {offsets = [0, 96], sizes = [8, 32], strides = [1, 1]} : vector<8x384xf32> to vector<8x32xf32>
    %c24 = arith.constant 24 : index
    %c0_8 = arith.constant 0 : index
    %11 = vector.load %arg6[%c24, %c0_8] : memref<96x32xf32, #tpu.memory_space<vmem>>, vector<8x32xf32>
    tpu.vector_store %arg6[%c24, %c0_8], %10 {strides = array<i32>} : memref<96x32xf32, #tpu.memory_space<vmem>>, vector<8x32xf32>,
    %12 = vector.extract_strided_slice %3 {offsets = [0, 128], sizes = [8, 32], strides = [1, 1]} : vector<8x384xf32> to vector<8x32xf32>
    %c32 = arith.constant 32 : index
    %c0_9 = arith.constant 0 : index
    %13 = vector.load %arg6[%c32, %c0_9] : memref<96x32xf32, #tpu.memory_space<vmem>>, vector<8x32xf32>
    tpu.vector_store %arg6[%c32, %c0_9], %12 {strides = array<i32>} : memref<96x32xf32, #tpu.memory_space<vmem>>, vector<8x32xf32>,
    %14 = vector.extract_strided_slice %3 {offsets = [0, 160], sizes = [8, 32], strides = [1, 1]} : vector<8x384xf32> to vector<8x32xf32>
    %c40 = arith.constant 40 : index
    %c0_10 = arith.constant 0 : index
    %15 = vector.load %arg6[%c40, %c0_10] : memref<96x32xf32, #tpu.memory_space<vmem>>, vector<8x32xf32>
    tpu.vector_store %arg6[%c40, %c0_10], %14 {strides = array<i32>} : memref<96x32xf32, #tpu.memory_space<vmem>>, vector<8x32xf32>,
    %16 = vector.extract_strided_slice %3 {offsets = [0, 192], sizes = [8, 32], strides = [1, 1]} : vector<8x384xf32> to vector<8x32xf32>
    %c48 = arith.constant 48 : index
    %c0_11 = arith.constant 0 : index
    %17 = vector.load %arg6[%c48, %c0_11] : memref<96x32xf32, #tpu.memory_space<vmem>>, vector<8x32xf32>
    tpu.vector_store %arg6[%c48, %c0_11], %16 {strides = array<i32>} : memref<96x32xf32, #tpu.memory_space<vmem>>, vector<8x32xf32>,
    %18 = vector.extract_strided_slice %3 {offsets = [0, 224], sizes = [8, 32], strides = [1, 1]} : vector<8x384xf32> to vector<8x32xf32>
    %c56 = arith.constant 56 : index
    %c0_12 = arith.constant 0 : index
    %19 = vector.load %arg6[%c56, %c0_12] : memref<96x32xf32, #tpu.memory_space<vmem>>, vector<8x32xf32>
    tpu.vector_store %arg6[%c56, %c0_12], %18 {strides = array<i32>} : memref<96x32xf32, #tpu.memory_space<vmem>>, vector<8x32xf32>,
    %20 = vector.extract_strided_slice %3 {offsets = [0, 256], sizes = [8, 32], strides = [1, 1]} : vector<8x384xf32> to vector<8x32xf32>
    %c64 = arith.constant 64 : index
    %c0_13 = arith.constant 0 : index
    %21 = vector.load %arg6[%c64, %c0_13] : memref<96x32xf32, #tpu.memory_space<vmem>>, vector<8x32xf32>
    tpu.vector_store %arg6[%c64, %c0_13], %20 {strides = array<i32>} : memref<96x32xf32, #tpu.memory_space<vmem>>, vector<8x32xf32>,
    %22 = vector.extract_strided_slice %3 {offsets = [0, 288], sizes = [8, 32], strides = [1, 1]} : vector<8x384xf32> to vector<8x32xf32>
    %c72 = arith.constant 72 : index
    %c0_14 = arith.constant 0 : index
    %23 = vector.load %arg6[%c72, %c0_14] : memref<96x32xf32, #tpu.memory_space<vmem>>, vector<8x32xf32>
    tpu.vector_store %arg6[%c72, %c0_14], %22 {strides = array<i32>} : memref<96x32xf32, #tpu.memory_space<vmem>>, vector<8x32xf32>,
    %24 = vector.extract_strided_slice %3 {offsets = [0, 320], sizes = [8, 32], strides = [1, 1]} : vector<8x384xf32> to vector<8x32xf32>
    %c80 = arith.constant 80 : index
    %c0_15 = arith.constant 0 : index
    %25 = vector.load %arg6[%c80, %c0_15] : memref<96x32xf32, #tpu.memory_space<vmem>>, vector<8x32xf32>
    tpu.vector_store %arg6[%c80, %c0_15], %24 {strides = array<i32>} : memref<96x32xf32, #tpu.memory_space<vmem>>, vector<8x32xf32>,
    %26 = vector.extract_strided_slice %3 {offsets = [0, 352], sizes = [8, 32], strides = [1, 1]} : vector<8x384xf32> to vector<8x32xf32>
    %c88 = arith.constant 88 : index
    %c0_16 = arith.constant 0 : index
    %27 = vector.load %arg6[%c88, %c0_16] : memref<96x32xf32, #tpu.memory_space<vmem>>, vector<8x32xf32>
    tpu.vector_store %arg6[%c88, %c0_16], %26 {strides = array<i32>} : memref<96x32xf32, #tpu.memory_space<vmem>>, vector<8x32xf32>,
    %c0_17 = arith.constant 0 : index
    %c0_18 = arith.constant 0 : index
    %c0_19 = arith.constant 0 : index
    %28 = vector.load %arg3[%c0_17, %c0_18, %c0_19] : memref<1x8x96xbf16, #tpu.memory_space<vmem>>, vector<1x8x96xbf16>
    %29 = vector.shape_cast %28 : vector<1x8x96xbf16> to vector<8x96xbf16>
    %30 = arith.extf %29 : vector<8x96xbf16> to vector<8x96xf32>
    %c0_20 = arith.constant 0 : index
    %c0_21 = arith.constant 0 : index
    %31 = vector.load %arg6[%c0_20, %c0_21] : memref<96x32xf32, #tpu.memory_space<vmem>>, vector<96x32xf32>
    %cst_22 = arith.constant dense<0.000000e+00> : vector<8x32xf32>
    %32 = tpu.matmul %30, %31, %cst_22 {dimension_numbers = #tpu.dot_dimension_numbers<[1], [0], [0], [1], [0, 0, 1, 1], [], []>} : vector<8x96xf32>, vector<96x32xf32>, vector<8x32xf32> -> vector<8x32xf32>
    %c0_23 = arith.constant 0 : index
    %c0_24 = arith.constant 0 : index
    %33 = vector.load %arg4[%c0_23, %c0_24] : memref<32x32xf32, #tpu.memory_space<vmem>>, vector<32x32xf32>
    %cst_25 = arith.constant 0.000000e+00 : f32
    %34 = vector.broadcast %cst_25 : f32 to vector<1x32xf32>
    %35 = vector.extract_strided_slice %32 {offsets = [0, 0], sizes = [1, 32], strides = [1, 1]} : vector<8x32xf32> to vector<1x32xf32>
    %cst_26 = arith.constant dense<0.000000e+00> : vector<1x32xf32>
    %36 = tpu.matmul %34, %33, %cst_26 {dimension_numbers = #tpu.dot_dimension_numbers<[1], [0], [0], [1], [0, 0, 1, 1], [], []>} : vector<1x32xf32>, vector<32x32xf32>, vector<1x32xf32> -> vector<1x32xf32>
    %37 = arith.addf %35, %36 : vector<1x32xf32>
    %38 = arith.negf %37 : vector<1x32xf32>
    %39 = math.exp %38 : vector<1x32xf32>
    %cst_27 = arith.constant 1.000000e+00 : f32
    %40 = vector.broadcast %cst_27 : f32 to vector<1x32xf32>
    %41 = arith.addf %40, %39 : vector<1x32xf32>
    %42 = arith.divf %40, %41 : vector<1x32xf32>
    %c0_28 = arith.constant 0 : index
    %c0_29 = arith.constant 0 : index
    %c0_30 = arith.constant 0 : index
    %43 = vector.load %arg5[%c0_28, %c0_29, %c0_30] : memref<1x8x32xf32, #tpu.memory_space<vmem>>, vector<1x1x32xf32>
    %44 = vector.shape_cast %43 : vector<1x1x32xf32> to vector<1x32xf32>
    %45 = vector.shape_cast %42 : vector<1x32xf32> to vector<1x1x32xf32>
    tpu.vector_store %arg5[%c0_28, %c0_29, %c0_30], %45 {strides = array<i32>} : memref<1x8x32xf32, #tpu.memory_space<vmem>>, vector<1x1x32xf32>,
    %46 = vector.extract_strided_slice %32 {offsets = [1, 0], sizes = [1, 32], strides = [1, 1]} : vector<8x32xf32> to vector<1x32xf32>
    %cst_31 = arith.constant dense<0.000000e+00> : vector<1x32xf32>
    %47 = tpu.matmul %42, %33, %cst_31 {dimension_numbers = #tpu.dot_dimension_numbers<[1], [0], [0], [1], [0, 0, 1, 1], [], []>} : vector<1x32xf32>, vector<32x32xf32>, vector<1x32xf32> -> vector<1x32xf32>
    %48 = arith.addf %46, %47 : vector<1x32xf32>
    %49 = arith.negf %48 : vector<1x32xf32>
    %50 = math.exp %49 : vector<1x32xf32>
    %cst_32 = arith.constant 1.000000e+00 : f32
    %51 = vector.broadcast %cst_32 : f32 to vector<1x32xf32>
    %52 = arith.addf %51, %50 : vector<1x32xf32>
    %53 = arith.divf %51, %52 : vector<1x32xf32>
    %c0_33 = arith.constant 0 : index
    %c1 = arith.constant 1 : index
    %c0_34 = arith.constant 0 : index
    %54 = vector.load %arg5[%c0_33, %c1, %c0_34] : memref<1x8x32xf32, #tpu.memory_space<vmem>>, vector<1x1x32xf32>
    %55 = vector.shape_cast %54 : vector<1x1x32xf32> to vector<1x32xf32>
    %56 = vector.shape_cast %53 : vector<1x32xf32> to vector<1x1x32xf32>
    tpu.vector_store %arg5[%c0_33, %c1, %c0_34], %56 {strides = array<i32>} : memref<1x8x32xf32, #tpu.memory_space<vmem>>, vector<1x1x32xf32>,
    %57 = vector.extract_strided_slice %32 {offsets = [2, 0], sizes = [1, 32], strides = [1, 1]} : vector<8x32xf32> to vector<1x32xf32>
    %cst_35 = arith.constant dense<0.000000e+00> : vector<1x32xf32>
    %58 = tpu.matmul %53, %33, %cst_35 {dimension_numbers = #tpu.dot_dimension_numbers<[1], [0], [0], [1], [0, 0, 1, 1], [], []>} : vector<1x32xf32>, vector<32x32xf32>, vector<1x32xf32> -> vector<1x32xf32>
    %59 = arith.addf %57, %58 : vector<1x32xf32>
    %60 = arith.negf %59 : vector<1x32xf32>
    %61 = math.exp %60 : vector<1x32xf32>
    %cst_36 = arith.constant 1.000000e+00 : f32
    %62 = vector.broadcast %cst_36 : f32 to vector<1x32xf32>
    %63 = arith.addf %62, %61 : vector<1x32xf32>
    %64 = arith.divf %62, %63 : vector<1x32xf32>
    %c0_37 = arith.constant 0 : index
    %c2 = arith.constant 2 : index
    %c0_38 = arith.constant 0 : index
    %65 = vector.load %arg5[%c0_37, %c2, %c0_38] : memref<1x8x32xf32, #tpu.memory_space<vmem>>, vector<1x1x32xf32>
    %66 = vector.shape_cast %65 : vector<1x1x32xf32> to vector<1x32xf32>
    %67 = vector.shape_cast %64 : vector<1x32xf32> to vector<1x1x32xf32>
    tpu.vector_store %arg5[%c0_37, %c2, %c0_38], %67 {strides = array<i32>} : memref<1x8x32xf32, #tpu.memory_space<vmem>>, vector<1x1x32xf32>,
    %68 = vector.extract_strided_slice %32 {offsets = [3, 0], sizes = [1, 32], strides = [1, 1]} : vector<8x32xf32> to vector<1x32xf32>
    %cst_39 = arith.constant dense<0.000000e+00> : vector<1x32xf32>
    %69 = tpu.matmul %64, %33, %cst_39 {dimension_numbers = #tpu.dot_dimension_numbers<[1], [0], [0], [1], [0, 0, 1, 1], [], []>} : vector<1x32xf32>, vector<32x32xf32>, vector<1x32xf32> -> vector<1x32xf32>
    %70 = arith.addf %68, %69 : vector<1x32xf32>
    %71 = arith.negf %70 : vector<1x32xf32>
    %72 = math.exp %71 : vector<1x32xf32>
    %cst_40 = arith.constant 1.000000e+00 : f32
    %73 = vector.broadcast %cst_40 : f32 to vector<1x32xf32>
    %74 = arith.addf %73, %72 : vector<1x32xf32>
    %75 = arith.divf %73, %74 : vector<1x32xf32>
    %c0_41 = arith.constant 0 : index
    %c3 = arith.constant 3 : index
    %c0_42 = arith.constant 0 : index
    %76 = vector.load %arg5[%c0_41, %c3, %c0_42] : memref<1x8x32xf32, #tpu.memory_space<vmem>>, vector<1x1x32xf32>
    %77 = vector.shape_cast %76 : vector<1x1x32xf32> to vector<1x32xf32>
    %78 = vector.shape_cast %75 : vector<1x32xf32> to vector<1x1x32xf32>
    tpu.vector_store %arg5[%c0_41, %c3, %c0_42], %78 {strides = array<i32>} : memref<1x8x32xf32, #tpu.memory_space<vmem>>, vector<1x1x32xf32>,
    %79 = vector.extract_strided_slice %32 {offsets = [4, 0], sizes = [1, 32], strides = [1, 1]} : vector<8x32xf32> to vector<1x32xf32>
    %cst_43 = arith.constant dense<0.000000e+00> : vector<1x32xf32>
    %80 = tpu.matmul %75, %33, %cst_43 {dimension_numbers = #tpu.dot_dimension_numbers<[1], [0], [0], [1], [0, 0, 1, 1], [], []>} : vector<1x32xf32>, vector<32x32xf32>, vector<1x32xf32> -> vector<1x32xf32>
    %81 = arith.addf %79, %80 : vector<1x32xf32>
    %82 = arith.negf %81 : vector<1x32xf32>
    %83 = math.exp %82 : vector<1x32xf32>
    %cst_44 = arith.constant 1.000000e+00 : f32
    %84 = vector.broadcast %cst_44 : f32 to vector<1x32xf32>
    %85 = arith.addf %84, %83 : vector<1x32xf32>
    %86 = arith.divf %84, %85 : vector<1x32xf32>
    %c0_45 = arith.constant 0 : index
    %c4 = arith.constant 4 : index
    %c0_46 = arith.constant 0 : index
    %87 = vector.load %arg5[%c0_45, %c4, %c0_46] : memref<1x8x32xf32, #tpu.memory_space<vmem>>, vector<1x1x32xf32>
    %88 = vector.shape_cast %87 : vector<1x1x32xf32> to vector<1x32xf32>
    %89 = vector.shape_cast %86 : vector<1x32xf32> to vector<1x1x32xf32>
    tpu.vector_store %arg5[%c0_45, %c4, %c0_46], %89 {strides = array<i32>} : memref<1x8x32xf32, #tpu.memory_space<vmem>>, vector<1x1x32xf32>,
    %90 = vector.extract_strided_slice %32 {offsets = [5, 0], sizes = [1, 32], strides = [1, 1]} : vector<8x32xf32> to vector<1x32xf32>
    %cst_47 = arith.constant dense<0.000000e+00> : vector<1x32xf32>
    %91 = tpu.matmul %86, %33, %cst_47 {dimension_numbers = #tpu.dot_dimension_numbers<[1], [0], [0], [1], [0, 0, 1, 1], [], []>} : vector<1x32xf32>, vector<32x32xf32>, vector<1x32xf32> -> vector<1x32xf32>
    %92 = arith.addf %90, %91 : vector<1x32xf32>
    %93 = arith.negf %92 : vector<1x32xf32>
    %94 = math.exp %93 : vector<1x32xf32>
    %cst_48 = arith.constant 1.000000e+00 : f32
    %95 = vector.broadcast %cst_48 : f32 to vector<1x32xf32>
    %96 = arith.addf %95, %94 : vector<1x32xf32>
    %97 = arith.divf %95, %96 : vector<1x32xf32>
    %c0_49 = arith.constant 0 : index
    %c5 = arith.constant 5 : index
    %c0_50 = arith.constant 0 : index
    %98 = vector.load %arg5[%c0_49, %c5, %c0_50] : memref<1x8x32xf32, #tpu.memory_space<vmem>>, vector<1x1x32xf32>
    %99 = vector.shape_cast %98 : vector<1x1x32xf32> to vector<1x32xf32>
    %100 = vector.shape_cast %97 : vector<1x32xf32> to vector<1x1x32xf32>
    tpu.vector_store %arg5[%c0_49, %c5, %c0_50], %100 {strides = array<i32>} : memref<1x8x32xf32, #tpu.memory_space<vmem>>, vector<1x1x32xf32>,
    %101 = vector.extract_strided_slice %32 {offsets = [6, 0], sizes = [1, 32], strides = [1, 1]} : vector<8x32xf32> to vector<1x32xf32>
    %cst_51 = arith.constant dense<0.000000e+00> : vector<1x32xf32>
    %102 = tpu.matmul %97, %33, %cst_51 {dimension_numbers = #tpu.dot_dimension_numbers<[1], [0], [0], [1], [0, 0, 1, 1], [], []>} : vector<1x32xf32>, vector<32x32xf32>, vector<1x32xf32> -> vector<1x32xf32>
    %103 = arith.addf %101, %102 : vector<1x32xf32>
    %104 = arith.negf %103 : vector<1x32xf32>
    %105 = math.exp %104 : vector<1x32xf32>
    %cst_52 = arith.constant 1.000000e+00 : f32
    %106 = vector.broadcast %cst_52 : f32 to vector<1x32xf32>
    %107 = arith.addf %106, %105 : vector<1x32xf32>
    %108 = arith.divf %106, %107 : vector<1x32xf32>
    %c0_53 = arith.constant 0 : index
    %c6 = arith.constant 6 : index
    %c0_54 = arith.constant 0 : index
    %109 = vector.load %arg5[%c0_53, %c6, %c0_54] : memref<1x8x32xf32, #tpu.memory_space<vmem>>, vector<1x1x32xf32>
    %110 = vector.shape_cast %109 : vector<1x1x32xf32> to vector<1x32xf32>
    %111 = vector.shape_cast %108 : vector<1x32xf32> to vector<1x1x32xf32>
    tpu.vector_store %arg5[%c0_53, %c6, %c0_54], %111 {strides = array<i32>} : memref<1x8x32xf32, #tpu.memory_space<vmem>>, vector<1x1x32xf32>,
    %112 = vector.extract_strided_slice %32 {offsets = [7, 0], sizes = [1, 32], strides = [1, 1]} : vector<8x32xf32> to vector<1x32xf32>
    %cst_55 = arith.constant dense<0.000000e+00> : vector<1x32xf32>
    %113 = tpu.matmul %108, %33, %cst_55 {dimension_numbers = #tpu.dot_dimension_numbers<[1], [0], [0], [1], [0, 0, 1, 1], [], []>} : vector<1x32xf32>, vector<32x32xf32>, vector<1x32xf32> -> vector<1x32xf32>
    %114 = arith.addf %112, %113 : vector<1x32xf32>
    %115 = arith.negf %114 : vector<1x32xf32>
    %116 = math.exp %115 : vector<1x32xf32>
    %cst_56 = arith.constant 1.000000e+00 : f32
    %117 = vector.broadcast %cst_56 : f32 to vector<1x32xf32>
    %118 = arith.addf %117, %116 : vector<1x32xf32>
    %119 = arith.divf %117, %118 : vector<1x32xf32>
    %c0_57 = arith.constant 0 : index
    %c7 = arith.constant 7 : index
    %c0_58 = arith.constant 0 : index
    %120 = vector.load %arg5[%c0_57, %c7, %c0_58] : memref<1x8x32xf32, #tpu.memory_space<vmem>>, vector<1x1x32xf32>
    %121 = vector.shape_cast %120 : vector<1x1x32xf32> to vector<1x32xf32>
    %122 = vector.shape_cast %119 : vector<1x32xf32> to vector<1x1x32xf32>
    tpu.vector_store %arg5[%c0_57, %c7, %c0_58], %122 {strides = array<i32>} : memref<1x8x32xf32, #tpu.memory_space<vmem>>, vector<1x1x32xf32>,
    return
  }
  func.func @transform_0(%arg0: i32) -> (i32, i32, i32) {
    %c0_i32 = arith.constant 0 : i32
    %c0_i32_0 = arith.constant 0 : i32
    %c0_i32_1 = arith.constant 0 : i32
    return %arg0, %c0_i32, %c0_i32_0 : i32, i32, i32
  }
  func.func @transform_1(%arg0: i32) -> (i32, i32) {
    %c0_i32 = arith.constant 0 : i32
    %c0_i32_0 = arith.constant 0 : i32
    %c0_i32_1 = arith.constant 0 : i32
    return %c0_i32, %c0_i32_0 : i32, i32
  }
  func.func @transform_2(%arg0: i32) -> (i32, i32, i32) {
    %c0_i32 = arith.constant 0 : i32
    %c0_i32_0 = arith.constant 0 : i32
    %c0_i32_1 = arith.constant 0 : i32
    return %arg0, %c0_i32, %c0_i32_0 : i32, i32, i32
  }
  func.func @transform_3(%arg0: i32) -> (i32, i32) {
    %c0_i32 = arith.constant 0 : i32
    %c0_i32_0 = arith.constant 0 : i32
    %c0_i32_1 = arith.constant 0 : i32
    return %c0_i32, %c0_i32_0 : i32, i32
  }
  func.func @transform_4(%arg0: i32) -> (i32, i32, i32) {
    %c0_i32 = arith.constant 0 : i32
    %c0_i32_0 = arith.constant 0 : i32
    %c0_i32_1 = arith.constant 0 : i32
    return %arg0, %c0_i32, %c0_i32_0 : i32, i32, i32
  }
}

</mosaic_0001>

<llo_original>
// kernel: tpu_custom_call.1
$region0: #{tpu_custom_call.1}
  #allocation0 [shape = 'u32[]', space=smem, size = 0x4, offset = 0x4, fixed_abs, tag = 'smem constant byte address 0x4 - core index']
  #allocation1 [shape = 'u32[144,128]{1,0:T(1,128)}', space=vmem, size = 0x12000, scoped, tag = 'internal scratch']
  #allocation2 [shape = 'f32[96,32]{1,0:T(8,128)}', space=vmem, size = 0xc000, scoped, tag = 'scratch operand']
  %s0 = inlined_call_operand.hbm [shape: f32[2,8,8], index: 0, kind: input, shape index: {}]
  %s1 = inlined_call_operand.hbm [shape: f32[8,384], index: 1, kind: input, shape index: {}]
  %s2 = inlined_call_operand.hbm [shape: bf16[2,8,96], index: 2, kind: input, shape index: {}]
  %s3 = inlined_call_operand.hbm [shape: f32[32,32], index: 3, kind: input, shape index: {}]
  %s4 = inlined_call_operand.hbm [shape: f32[2,8,32], index: 4, kind: output, shape index: {}]
  %s5 = sld [smem:[#allocation0]]
  $region65: #{tpu_custom_call.1} parent=0
    _
  %s7 = ssub.s32 1, %s5
  %s8 = scalar_select 0, %s7, %s5
  $region1: #{tpu_custom_call.1} parent=0
    #allocation3 [shape = 'u8[8192]{0}', space=vmem, size = 0x2000, scoped, tag = 'input window, operand 0']
    #allocation4 [shape = 's32[2]{0}', space=sflag, size = 0x8, scoped, tag = 'scoped memory for tpu_custom_call.1']
    #allocation5 [shape = 's32[2]{0}', space=sflag, size = 0x8, scoped, tag = 'scoped memory for tpu_custom_call.1']
    #allocation6 [shape = 'u8[12288]{0}', space=vmem, size = 0x3000, scoped, tag = 'input window, operand 1, single buffered']
    #allocation7 [shape = 's32[1]{0}', space=sflag, size = 0x4, scoped, tag = 'scoped memory for tpu_custom_call.1']
    #allocation8 [shape = 'u8[4096]{0}', space=vmem, size = 0x1000, scoped, tag = 'input window, operand 2']
    #allocation9 [shape = 'u8[16384]{0}', space=vmem, size = 0x4000, scoped, tag = 'input window, operand 3, single buffered']
    #allocation10 [shape = 'u8[8192]{0}', space=vmem, size = 0x2000, scoped, tag = 'output window, operand 0']
    %9 = vsyncpa [#allocation4], 0
    %s10 = scalar_lea.sflag [#allocation4], 1
    %11 = vsyncpa %s10, 0
    %12 = vsyncpa [#allocation7], 0
    %13 = vsyncpa [#allocation5], 0
    %s14 = scalar_lea.sflag [#allocation5], 1
    %15 = vsyncpa %s14, 0
    loop: start=0, step=1, limit=4
    $region2: #{tpu_custom_call.1} parent=1 // loop_pre_header
      _
    $region3: #{tpu_custom_call.1} parent=1 // loop_header
      %s17 = sphi 0, %s21
      %p18 = scmp.ge.s32.totalorder %s17, 4
      %s27 = sphi 0, %s29
      %s30 = sphi 0, %s27
      %s31 = sphi 0, %s30
      %s47 = sphi 0, %s31
      %s51 = sphi 0, %s51
      %s53 = sphi 0, %s51
      %s54 = sphi 0, %s53
      %s68 = sphi 0, %s54
      %s74 = sphi 0, %s76
      %s77 = sphi 0, %s74
      %s78 = sphi 0, %s77
      %s94 = sphi 0, %s78
      %s98 = sphi 0, %s98
      %s100 = sphi 0, %s98
      %s101 = sphi 0, %s100
      %s115 = sphi 0, %s101
      %s121 = sphi 0, %s123
      %s124 = sphi 0, %s121
      %s125 = sphi 0, %s124
      %s141 = sphi 0, %s125
    $region4: #{tpu_custom_call.1} parent=1 // loop_header_branch
      %20 = sbr.rel (%p18) target = $region8
    $region5: #{tpu_custom_call.1} parent=1 // loop_body
      %s22 = ssub.s32 %s17, 1
      %s23 = ssub.s32 %s17, 2
      %s24 = sadd.s32 %s17, 1
      %s25 = ssub.s32 %s17, %s24
      %p26 = scmp.eq.s32.totalorder %s25, 0
      %s28 = sadd.s32 %s27, 1
      %s29 = scalar_select %p26, %s27, %s28
      %p32 = pneg %p26
      %p33 = scmp.eq.s32.totalorder %s17, 1
      %p34 = por %p32, %p33
      %p35 = scmp.ne.s32.totalorder %s27, %s30
      %p36 = scmp.eq.s32.totalorder %s17, 0
      %p37 = por %p35, %p36
      %p38 = scmp.ne.s32.totalorder %s27, %s30
      %p39 = scmp.eq.s32.totalorder %s22, 1
      %p40 = por %p38, %p39
      %p41 = scmp.ne.s32.totalorder %s30, %s31
      %p42 = scmp.eq.s32.totalorder %s22, 0
      %p43 = por %p41, %p42
      %p44 = scmp.ne.s32.totalorder %s30, %s31
      %p45 = scmp.eq.s32.totalorder %s23, 1
      %p46 = por %p44, %p45
      %p48 = scmp.ne.s32.totalorder %s31, %s47
      %p49 = scmp.eq.s32.totalorder %s23, 0
      %p50 = por %p48, %p49
      %s52 = sadd.s32 %s51, 1
      %p55 = scmp.eq.s32.totalorder %s17, 1
      %p56 = scmp.ne.s32.totalorder %s51, %s53
      %p57 = scmp.eq.s32.totalorder %s17, 0
      %p58 = por %p56, %p57
      %p59 = scmp.ne.s32.totalorder %s51, %s53
      %p60 = scmp.eq.s32.totalorder %s22, 1
      %p61 = por %p59, %p60
      %p62 = scmp.ne.s32.totalorder %s53, %s54
      %p63 = scmp.eq.s32.totalorder %s22, 0
      %p64 = por %p62, %p63
      %p65 = scmp.ne.s32.totalorder %s53, %s54
      %p66 = scmp.eq.s32.totalorder %s23, 1
      %p67 = por %p65, %p66
      %p69 = scmp.ne.s32.totalorder %s54, %s68
      %p70 = scmp.eq.s32.totalorder %s23, 0
      %p71 = por %p69, %p70
      %s72 = ssub.s32 %s17, %s24
      %p73 = scmp.eq.s32.totalorder %s72, 0
      %s75 = sadd.s32 %s74, 1
      %s76 = scalar_select %p73, %s74, %s75
      %p79 = pneg %p73
      %p80 = scmp.eq.s32.totalorder %s17, 1
      %p81 = por %p79, %p80
      %p82 = scmp.ne.s32.totalorder %s74, %s77
      %p83 = scmp.eq.s32.totalorder %s17, 0
      %p84 = por %p82, %p83
      %p85 = scmp.ne.s32.totalorder %s74, %s77
      %p86 = scmp.eq.s32.totalorder %s22, 1
      %p87 = por %p85, %p86
      %p88 = scmp.ne.s32.totalorder %s77, %s78
      %p89 = scmp.eq.s32.totalorder %s22, 0
      %p90 = por %p88, %p89
      %p91 = scmp.ne.s32.totalorder %s77, %s78
      %p92 = scmp.eq.s32.totalorder %s23, 1
      %p93 = por %p91, %p92
      %p95 = scmp.ne.s32.totalorder %s78, %s94
      %p96 = scmp.eq.s32.totalorder %s23, 0
      %p97 = por %p95, %p96
      %s99 = sadd.s32 %s98, 1
      %p102 = scmp.eq.s32.totalorder %s17, 1
      %p103 = scmp.ne.s32.totalorder %s98, %s100
      %p104 = scmp.eq.s32.totalorder %s17, 0
      %p105 = por %p103, %p104
      %p106 = scmp.ne.s32.totalorder %s98, %s100
      %p107 = scmp.eq.s32.totalorder %s22, 1
      %p108 = por %p106, %p107
      %p109 = scmp.ne.s32.totalorder %s100, %s101
      %p110 = scmp.eq.s32.totalorder %s22, 0
      %p111 = por %p109, %p110
      %p112 = scmp.ne.s32.totalorder %s100, %s101
      %p113 = scmp.eq.s32.totalorder %s23, 1
      %p114 = por %p112, %p113
      %p116 = scmp.ne.s32.totalorder %s101, %s115
      %p117 = scmp.eq.s32.totalorder %s23, 0
      %p118 = por %p116, %p117
      %s119 = ssub.s32 %s17, %s24
      %p120 = scmp.eq.s32.totalorder %s119, 0
      %s122 = sadd.s32 %s121, 1
      %s123 = scalar_select %p120, %s121, %s122
      %p126 = pneg %p120
      %p127 = scmp.eq.s32.totalorder %s17, 1
      %p128 = por %p126, %p127
      %p129 = scmp.ne.s32.totalorder %s121, %s124
      %p130 = scmp.eq.s32.totalorder %s17, 0
      %p131 = por %p129, %p130
      %p132 = scmp.ne.s32.totalorder %s121, %s124
      %p133 = scmp.eq.s32.totalorder %s22, 1
      %p134 = por %p132, %p133
      %p135 = scmp.ne.s32.totalorder %s124, %s125
      %p136 = scmp.eq.s32.totalorder %s22, 0
      %p137 = por %p135, %p136
      %p138 = scmp.ne.s32.totalorder %s124, %s125
      %p139 = scmp.eq.s32.totalorder %s23, 1
      %p140 = por %p138, %p139
      %p142 = scmp.ne.s32.totalorder %s125, %s141
      %p143 = scmp.eq.s32.totalorder %s23, 0
      %p144 = por %p142, %p143
      %p145 = scmp.le.s32.totalorder 1, %s17
      %p146 = scmp.lt.s32.totalorder %s17, 3
      %p147 = pnand %p145, %p146
      %p148 = pneg %p147
      // Predicated region
      $region9: #{tpu_custom_call.1} parent=5 // pred_check
        _
      $region10: #{tpu_custom_call.1} parent=5 // pred_check_branch
        %150 = sbr.rel (%p147) target = $region12
      $region11: #{tpu_custom_call.1} parent=5 // pred_region
        %s151 = ssub.s32 %s17, 1
        // Predicated region
        $region13: #{tpu_custom_call.1} parent=11 // pred_check
          %p152 = pneg %p64
        $region14: #{tpu_custom_call.1} parent=11 // pred_check_branch
          %154 = sbr.rel (%p152) target = $region16
        $region15: #{tpu_custom_call.1} parent=11 // pred_region
          %s156 = ssub.s32 384, 384
          %157 = vsyncadd [#allocation7], %s156
          %s159 = sshll.u32 [#allocation6], 4
          %s160 = int_to_ptr.vmem [resolvable:$true] %s159
          %162 = dma.hbm_to_vmem [thread:$0]  %s1, 384, %s160, [#allocation7]
        $region16: #{tpu_custom_call.1} parent=11 // pred_fallthru
          _
        // Predicated region
        $region17: #{tpu_custom_call.1} parent=11 // pred_check
          %p163 = pneg %p111
        $region18: #{tpu_custom_call.1} parent=11 // pred_check_branch
          %165 = sbr.rel (%p163) target = $region20
        $region19: #{tpu_custom_call.1} parent=11 // pred_region
          %s167 = ssub.s32 512, 512
          %168 = vsyncadd [#allocation7], %s167
          %s169 = sshll.u32 [#allocation9], 4
          %s170 = int_to_ptr.vmem [resolvable:$true] %s169
          %175 = dma.hbm_to_vmem [thread:$0]  %s3, 512, %s170, [#allocation7], 128, 128, 8
        $region20: #{tpu_custom_call.1} parent=11 // pred_fallthru
          _
      $region12: #{tpu_custom_call.1} parent=5 // pred_fallthru
        _
      %p176 = scmp.lt.s32.totalorder %s17, 2
      // Predicated region
      $region21: #{tpu_custom_call.1} parent=5 // pred_check
        %p177 = pneg %p176
      $region22: #{tpu_custom_call.1} parent=5 // pred_check_branch
        %179 = sbr.rel (%p177) target = $region24
      $region23: #{tpu_custom_call.1} parent=5 // pred_region
        // Predicated region
        $region25: #{tpu_custom_call.1} parent=23 // pred_check
          %p180 = pneg %p37
        $region26: #{tpu_custom_call.1} parent=23 // pred_check_branch
          %182 = sbr.rel (%p180) target = $region28
        $region27: #{tpu_custom_call.1} parent=23 // pred_region
          %s183 = sand.u32 %s17, 1
          %s184 = scalar_lea.sflag [#allocation4], %s183
          %s185 = sand.u32 %s27, 1
          %s186 = smul.addr %s185, 8
          %s187 = scalar_lea.vmem [#allocation3], %s186
          %s189 = ssub.s32 128, 128
          %190 = vsyncadd %s184, %s189
          %s191 = smul.addr %s17, 128
          %s192 = scalar_lea.hbm %s0, %s191
          %s194 = sshll.u32 %s187, 4
          %s195 = int_to_ptr.vmem [resolvable:$true] %s194
          %197 = dma.hbm_to_vmem [thread:$0]  %s192, 128, %s195, %s184
        $region28: #{tpu_custom_call.1} parent=23 // pred_fallthru
          _
        // Predicated region
        $region29: #{tpu_custom_call.1} parent=23 // pred_check
          %p198 = pneg %p84
        $region30: #{tpu_custom_call.1} parent=23 // pred_check_branch
          %200 = sbr.rel (%p198) target = $region32
        $region31: #{tpu_custom_call.1} parent=23 // pred_region
          %s201 = sand.u32 %s17, 1
          %s202 = scalar_lea.sflag [#allocation4], %s201
          %s203 = sand.u32 %s74, 1
          %s204 = smul.addr %s203, 4
          %s205 = scalar_lea.vmem [#allocation8], %s204
          %s207 = ssub.s32 64, 64
          %208 = vsyncadd %s202, %s207
          %s209 = smul.addr %s17, 64
          %s210 = scalar_lea.hbm %s2, %s209
          %s212 = sshll.u32 %s205, 4
          %s213 = int_to_ptr.vmem [resolvable:$true] %s212
          %215 = dma.hbm_to_vmem [thread:$0]  %s210, 64, %s213, %s202
        $region32: #{tpu_custom_call.1} parent=23 // pred_fallthru
          _
      $region24: #{tpu_custom_call.1} parent=5 // pred_fallthru
        _
      %p216 = scmp.le.s32.totalorder 1, %s17
      %p217 = scmp.lt.s32.totalorder %s17, 3
      %p218 = pnand %p216, %p217
      %p219 = pneg %p218
      // Predicated region
      $region33: #{tpu_custom_call.1} parent=5 // pred_check
        _
      $region34: #{tpu_custom_call.1} parent=5 // pred_check_branch
        %221 = sbr.rel (%p218) target = $region36
      $region35: #{tpu_custom_call.1} parent=5 // pred_region
        %s222 = ssub.s32 %s17, 1
        %s223 = sand.u32 %s22, 1
        %s224 = scalar_lea.sflag [#allocation4], %s223
        %s225 = sand.u32 %s30, 1
        %s226 = smul.addr %s225, 8
        %s227 = scalar_lea.vmem [#allocation3], %s226
        // Predicated region
        $region37: #{tpu_custom_call.1} parent=35 // pred_check
          %p228 = pneg %p43
        $region38: #{tpu_custom_call.1} parent=35 // pred_check_branch
          %230 = sbr.rel (%p228) target = $region40
        $region39: #{tpu_custom_call.1} parent=35 // pred_region
          %231 = dma.done %s224, 128
        $region40: #{tpu_custom_call.1} parent=35 // pred_fallthru
          _
        // Predicated region
        $region41: #{tpu_custom_call.1} parent=35 // pred_check
          %p232 = pneg %p64
        $region42: #{tpu_custom_call.1} parent=35 // pred_check_branch
          %234 = sbr.rel (%p232) target = $region44
        $region43: #{tpu_custom_call.1} parent=35 // pred_region
          %235 = dma.done [#allocation7], 384
        $region44: #{tpu_custom_call.1} parent=35 // pred_fallthru
          _
        %s236 = sand.u32 %s22, 1
        %s237 = scalar_lea.sflag [#allocation4], %s236
        %s238 = sand.u32 %s77, 1
        %s239 = smul.addr %s238, 4
        %s240 = scalar_lea.vmem [#allocation8], %s239
        // Predicated region
        $region45: #{tpu_custom_call.1} parent=35 // pred_check
          %p241 = pneg %p90
        $region46: #{tpu_custom_call.1} parent=35 // pred_check_branch
          %243 = sbr.rel (%p241) target = $region48
        $region47: #{tpu_custom_call.1} parent=35 // pred_region
          %244 = dma.done %s237, 64
        $region48: #{tpu_custom_call.1} parent=35 // pred_fallthru
          _
        // Predicated region
        $region49: #{tpu_custom_call.1} parent=35 // pred_check
          %p245 = pneg %p111
        $region50: #{tpu_custom_call.1} parent=35 // pred_check_branch
          %247 = sbr.rel (%p245) target = $region52
        $region51: #{tpu_custom_call.1} parent=35 // pred_region
          %248 = dma.done [#allocation7], 512
        $region52: #{tpu_custom_call.1} parent=35 // pred_fallthru
          _
        %s249 = sand.u32 %s22, 1
        %s250 = scalar_lea.sflag [#allocation4], %s249
        %s251 = sand.u32 %s30, 1
        %s252 = smul.addr %s251, 8
        %s253 = scalar_lea.vmem [#allocation3], %s252
        %p254 = pneg %p43
        %p255 = pneg %p40
        %p256 = pneg %p64
        %p257 = pneg %p61
        %s258 = sand.u32 %s22, 1
        %s259 = scalar_lea.sflag [#allocation4], %s258
        %s260 = sand.u32 %s77, 1
        %s261 = smul.addr %s260, 4
        %s262 = scalar_lea.vmem [#allocation8], %s261
        %p263 = pneg %p90
        %p264 = pneg %p87
        %p265 = pneg %p111
        %p266 = pneg %p108
        %p267 = pneg %p137
        %p268 = pneg %p134
        %s269 = sand.u32 %s124, 1
        %s270 = scalar_lea.sflag [#allocation5], %s269
        %s271 = sand.u32 %s124, 1
        %s272 = smul.addr %s271, 8
        %s273 = scalar_lea.vmem [#allocation10], %s272
        %v274 = vld [vmem:[%s227] sm:$0xff]
        %v275 = vld [vmem:[#allocation6] sm:$0xff]
        %v276 = vld [vmem:[#allocation6 + $0x8] sm:$0xff]
        %v277 = vld [vmem:[#allocation6 + $0x10] sm:$0xff]
        %vm278 = vcmask 64512
        %v280 = vsel %vm278, %v274, 0
        %282 = vmatprep.subr.mxu0 %v276
        %283 = vmatpush1.msra.mxu0 %v275
        %284 = vmatprep.subr.mxu0 0.0
        %285 = vmatpush1.msra.mxu0 0.0
        %286 = vmatprep.subr.mxu0 0.0
        %287 = vmatpush1.msra.mxu0 0.0
        %288 = vmatprep.subr.mxu0 0.0
        %289 = vmatpush1.msra.mxu0 0.0
        %290 = vmatprep.subr.mxu0 0.0
        %291 = vmatpush1.msra.mxu0 0.0
        %292 = vmatprep.subr.mxu0 0.0
        %293 = vmatpush1.msra.mxu0 0.0
        %294 = vmatprep.subr.mxu0 0.0
        %295 = vmatpush1.msra.mxu0 0.0
        %296 = vmatprep.subr.mxu0 0.0
        %297 = vmatpush1.msra.mxu0 0.0
        %298 = vmatprep.subr.mxu0 0.0
        %299 = vmatpush1.msra.mxu0 0.0
        %300 = vmatprep.subr.mxu0 0.0
        %301 = vmatpush1.msra.mxu0 0.0
        %302 = vmatprep.subr.mxu0 0.0
        %303 = vmatpush1.msra.mxu0 0.0
        %304 = vmatprep.subr.mxu0 0.0
        %305 = vmatpush1.msra.mxu0 0.0
        %306 = vmatprep.subr.mxu0 0.0
        %307 = vmatpush1.msra.mxu0 0.0
        %308 = vmatprep.subr.mxu0 0.0
        %309 = vmatpush1.msra.mxu0 0.0
        %310 = vmatprep.subr.mxu0 0.0
        %311 = vmatpush1.msra.mxu0 0.0
        %312 = vmatprep.subr.mxu0 0.0
        %313 = vmatpush1.msra.mxu0 0.0
        %314 = vmatprep.subr.mxu0 0.0
        %315 = vmatpush1.msra.mxu0 0.0
        %316 = vmatprep.subr.mxu0 0.0
        %317 = vmatpush1.msra.mxu0 0.0
        %318 = vmatprep.subr.mxu0 0.0
        %319 = vmatpush1.msra.mxu0 0.0
        %320 = vmatprep.subr.mxu0 0.0
        %321 = vmatpush1.msra.mxu0 0.0
        %322 = vmatprep.subr.mxu0 0.0
        %323 = vmatpush1.msra.mxu0 0.0
        %324 = vmatprep.subr.mxu0 0.0
        %325 = vmatpush1.msra.mxu0 0.0
        %326 = vmatprep.subr.mxu0 0.0
        %327 = vmatpush1.msra.mxu0 0.0
        %328 = vmatprep.subr.mxu0 0.0
        %329 = vmatpush1.msra.mxu0 0.0
        %330 = vmatprep.subr.mxu0 0.0
        %331 = vmatpush1.msra.mxu0 0.0
        %332 = vmatprep.subr.mxu0 0.0
        %333 = vmatpush1.msra.mxu0 0.0
        %334 = vmatprep.subr.mxu0 0.0
        %335 = vmatpush1.msra.mxu0 0.0
        %336 = vmatprep.subr.mxu0 0.0
        %337 = vmatpush1.msra.mxu0 0.0
        %338 = vmatprep.subr.mxu0 0.0
        %339 = vmatpush1.msra.mxu0 0.0
        %340 = vmatprep.subr.mxu0 0.0
        %341 = vmatpush1.msra.mxu0 0.0
        %342 = vmatprep.subr.mxu0 0.0
        %343 = vmatpush1.msra.mxu0 0.0
        %344 = vmatprep.subr.mxu0 0.0
        %345 = vmatpush1.msra.mxu0 0.0
        %346 = vmatprep.mubr.f32.mxu0 0.0
        %347 = vmatmul.mubr.f32.gmra.mrb[0].mxu0 %v280
        %v348 = vpop.f32.mrb[0].mxu0
        %v349 = vadd.f32 0.0, %v348
        %v350 = vpop.f32.mrb[0].mxu0
        %v351 = vadd.f32 0.0, %v350
        %352 = vdwg.mxu0
        %353 = vmatprep.subr.mxu0 0.0
        %354 = vmatpush1.msra.mxu0 %v277
        %355 = vmatprep.subr.mxu0 0.0
        %356 = vmatpush1.msra.mxu0 0.0
        %357 = vmatprep.subr.mxu0 0.0
        %358 = vmatpush1.msra.mxu0 0.0
        %359 = vmatprep.subr.mxu0 0.0
        %360 = vmatpush1.msra.mxu0 0.0
        %361 = vmatprep.subr.mxu0 0.0
        %362 = vmatpush1.msra.mxu0 0.0
        %363 = vmatprep.subr.mxu0 0.0
        %364 = vmatpush1.msra.mxu0 0.0
        %365 = vmatprep.subr.mxu0 0.0
        %366 = vmatpush1.msra.mxu0 0.0
        %367 = vmatprep.subr.mxu0 0.0
        %368 = vmatpush1.msra.mxu0 0.0
        %369 = vmatprep.subr.mxu0 0.0
        %370 = vmatpush1.msra.mxu0 0.0
        %371 = vmatprep.subr.mxu0 0.0
        %372 = vmatpush1.msra.mxu0 0.0
        %373 = vmatprep.subr.mxu0 0.0
        %374 = vmatpush1.msra.mxu0 0.0
        %375 = vmatprep.subr.mxu0 0.0
        %376 = vmatpush1.msra.mxu0 0.0
        %377 = vmatprep.subr.mxu0 0.0
        %378 = vmatpush1.msra.mxu0 0.0
        %379 = vmatprep.subr.mxu0 0.0
        %380 = vmatpush1.msra.mxu0 0.0
        %381 = vmatprep.subr.mxu0 0.0
        %382 = vmatpush1.msra.mxu0 0.0
        %383 = vmatprep.subr.mxu0 0.0
        %384 = vmatpush1.msra.mxu0 0.0
        %385 = vmatprep.subr.mxu0 0.0
        %386 = vmatpush1.msra.mxu0 0.0
        %387 = vmatprep.subr.mxu0 0.0
        %388 = vmatpush1.msra.mxu0 0.0
        %389 = vmatprep.subr.mxu0 0.0
        %390 = vmatpush1.msra.mxu0 0.0
        %391 = vmatprep.subr.mxu0 0.0
        %392 = vmatpush1.msra.mxu0 0.0
        %393 = vmatprep.subr.mxu0 0.0
        %394 = vmatpush1.msra.mxu0 0.0
        %395 = vmatprep.subr.mxu0 0.0
        %396 = vmatpush1.msra.mxu0 0.0
        %397 = vmatprep.subr.mxu0 0.0
        %398 = vmatpush1.msra.mxu0 0.0
        %399 = vmatprep.subr.mxu0 0.0
        %400 = vmatpush1.msra.mxu0 0.0
        %401 = vmatprep.subr.mxu0 0.0
        %402 = vmatpush1.msra.mxu0 0.0
        %403 = vmatprep.subr.mxu0 0.0
        %404 = vmatpush1.msra.mxu0 0.0
        %405 = vmatprep.subr.mxu0 0.0
        %406 = vmatpush1.msra.mxu0 0.0
        %407 = vmatprep.subr.mxu0 0.0
        %408 = vmatpush1.msra.mxu0 0.0
        %409 = vmatprep.subr.mxu0 0.0
        %410 = vmatpush1.msra.mxu0 0.0
        %411 = vmatprep.subr.mxu0 0.0
        %412 = vmatpush1.msra.mxu0 0.0
        %413 = vmatprep.subr.mxu0 0.0
        %414 = vmatpush1.msra.mxu0 0.0
        %415 = vmatprep.subr.mxu0 0.0
        %416 = vmatpush1.msra.mxu0 0.0
        %417 = vmatprep.mubr.f32.mxu0 0.0
        %418 = vmatmul.mubr.f32.gmra.mrb[0].mxu0 %v280
        %v419 = vpop.f32.mrb[0].mxu0
        %v420 = vadd.f32 0.0, %v419
        %v421 = vpop.f32.mrb[0].mxu0
        %422 = vdwg.mxu0
        %vm423 = vcmask 261120
        %424 = vst.msk [vmem:[#allocation2] sm:$0xff] %vm423, %v349
        %426 = vrot.lane.b32.xlu0 %v349, 96
        %v427 = vpop.permute.xlu0 %426
        %429 = vst.msk [vmem:[#allocation2 + $0x8] sm:$0xff] %vm423, %v427
        %430 = vrot.lane.b32.xlu0 %v349, 64
        %v431 = vpop.permute.xlu0 %430
        %433 = vst.msk [vmem:[#allocation2 + $0x10] sm:$0xff] %vm423, %v431
        %434 = vrot.lane.b32.xlu0 %v349, 32
        %v435 = vpop.permute.xlu0 %434
        %437 = vst.msk [vmem:[#allocation2 + $0x18] sm:$0xff] %vm423, %v435
        %438 = vst.msk [vmem:[#allocation2 + $0x20] sm:$0xff] %vm423, %v351
        %440 = vrot.lane.b32.xlu0 %v351, 96
        %v441 = vpop.permute.xlu0 %440
        %443 = vst.msk [vmem:[#allocation2 + $0x28] sm:$0xff] %vm423, %v441
        %444 = vrot.lane.b32.xlu0 %v351, 64
        %v445 = vpop.permute.xlu0 %444
        %447 = vst.msk [vmem:[#allocation2 + $0x30] sm:$0xff] %vm423, %v445
        %448 = vrot.lane.b32.xlu0 %v351, 32
        %v449 = vpop.permute.xlu0 %448
        %451 = vst.msk [vmem:[#allocation2 + $0x38] sm:$0xff] %vm423, %v449
        %452 = vst.msk [vmem:[#allocation2 + $0x40] sm:$0xff] %vm423, %v420
        %454 = vrot.lane.b32.xlu0 %v420, 96
        %v455 = vpop.permute.xlu0 %454
        %457 = vst.msk [vmem:[#allocation2 + $0x48] sm:$0xff] %vm423, %v455
        %458 = vrot.lane.b32.xlu0 %v420, 64
        %v459 = vpop.permute.xlu0 %458
        %461 = vst.msk [vmem:[#allocation2 + $0x50] sm:$0xff] %vm423, %v459
        %462 = vrot.lane.b32.xlu0 %v420, 32
        %v463 = vpop.permute.xlu0 %462
        %465 = vst.msk [vmem:[#allocation2 + $0x58] sm:$0xff] %vm423, %v463
        %v466 = vld [vmem:[%s240] sm:$0xf]
        %v467 = vunpack.c.l.bf16 %v466
        %v468 = vld [vmem:[#allocation2] sm:$0xff]
        %v469 = vld [vmem:[#allocation2 + $0x8] sm:$0xff]
        %v470 = vld [vmem:[#allocation2 + $0x10] sm:$0xff]
        %v471 = vld [vmem:[#allocation2 + $0x18] sm:$0xff]
        %v472 = vld [vmem:[#allocation2 + $0x20] sm:$0xff]
        %v473 = vld [vmem:[#allocation2 + $0x28] sm:$0xff]
        %v474 = vld [vmem:[#allocation2 + $0x30] sm:$0xff]
        %v475 = vld [vmem:[#allocation2 + $0x38] sm:$0xff]
        %v476 = vld [vmem:[#allocation2 + $0x40] sm:$0xff]
        %v477 = vld [vmem:[#allocation2 + $0x48] sm:$0xff]
        %v478 = vld [vmem:[#allocation2 + $0x50] sm:$0xff]
        %v479 = vld [vmem:[#allocation2 + $0x58] sm:$0xff]
        %vm480 = vcmask 785408
        %v482 = vsel %vm480, %v467, 0
        %484 = vmatprep.subr.mxu0 0.0
        %485 = vmatpush1.msra.mxu0 %v468
        %486 = vmatprep.subr.mxu0 0.0
        %487 = vmatpush1.msra.mxu0 %v469
        %488 = vmatprep.subr.mxu0 0.0
        %489 = vmatpush1.msra.mxu0 %v470
        %490 = vmatprep.subr.mxu0 0.0
        %491 = vmatpush1.msra.mxu0 %v471
        %492 = vmatprep.subr.mxu0 0.0
        %493 = vmatpush1.msra.mxu0 %v472
        %494 = vmatprep.subr.mxu0 0.0
        %495 = vmatpush1.msra.mxu0 %v473
        %496 = vmatprep.subr.mxu0 0.0
        %497 = vmatpush1.msra.mxu0 %v474
        %498 = vmatprep.subr.mxu0 0.0
        %499 = vmatpush1.msra.mxu0 %v475
        %500 = vmatprep.subr.mxu0 0.0
        %501 = vmatpush1.msra.mxu0 %v476
        %502 = vmatprep.subr.mxu0 0.0
        %503 = vmatpush1.msra.mxu0 %v477
        %504 = vmatprep.subr.mxu0 0.0
        %505 = vmatpush1.msra.mxu0 %v478
        %506 = vmatprep.subr.mxu0 0.0
        %507 = vmatpush1.msra.mxu0 %v479
        %508 = vmatprep.subr.mxu0 0.0
        %509 = vmatpush1.msra.mxu0 0.0
        %510 = vmatprep.subr.mxu0 0.0
        %511 = vmatpush1.msra.mxu0 0.0
        %512 = vmatprep.subr.mxu0 0.0
        %513 = vmatpush1.msra.mxu0 0.0
        %514 = vmatprep.subr.mxu0 0.0
        %515 = vmatpush1.msra.mxu0 0.0
        %516 = vmatprep.subr.mxu0 0.0
        %517 = vmatpush1.msra.mxu0 0.0
        %518 = vmatprep.subr.mxu0 0.0
        %519 = vmatpush1.msra.mxu0 0.0
        %520 = vmatprep.subr.mxu0 0.0
        %521 = vmatpush1.msra.mxu0 0.0
        %522 = vmatprep.subr.mxu0 0.0
        %523 = vmatpush1.msra.mxu0 0.0
        %524 = vmatprep.subr.mxu0 0.0
        %525 = vmatpush1.msra.mxu0 0.0
        %526 = vmatprep.subr.mxu0 0.0
        %527 = vmatpush1.msra.mxu0 0.0
        %528 = vmatprep.subr.mxu0 0.0
        %529 = vmatpush1.msra.mxu0 0.0
        %530 = vmatprep.subr.mxu0 0.0
        %531 = vmatpush1.msra.mxu0 0.0
        %532 = vmatprep.subr.mxu0 0.0
        %533 = vmatpush1.msra.mxu0 0.0
        %534 = vmatprep.subr.mxu0 0.0
        %535 = vmatpush1.msra.mxu0 0.0
        %536 = vmatprep.subr.mxu0 0.0
        %537 = vmatpush1.msra.mxu0 0.0
        %538 = vmatprep.subr.mxu0 0.0
        %539 = vmatpush1.msra.mxu0 0.0
        %540 = vmatprep.subr.mxu0 0.0
        %541 = vmatpush1.msra.mxu0 0.0
        %542 = vmatprep.subr.mxu0 0.0
        %543 = vmatpush1.msra.mxu0 0.0
        %544 = vmatprep.subr.mxu0 0.0
        %545 = vmatpush1.msra.mxu0 0.0
        %546 = vmatprep.subr.mxu0 0.0
        %547 = vmatpush1.msra.mxu0 0.0
        %548 = vmatprep.mubr.f32.mxu0 0.0
        %549 = vmatmul.mubr.f32.gmra.mrb[0].mxu0 %v482
        %v550 = vpop.f32.mrb[0].mxu0
        %v551 = vadd.f32 0.0, %v550
        %v552 = vpop.f32.mrb[0].mxu0
        %553 = vdwg.mxu0
        %v554 = vld [vmem:[#allocation9] sm:$0xff]
        %v555 = vld [vmem:[#allocation9 + $0x8] sm:$0xff]
        %v556 = vld [vmem:[#allocation9 + $0x10] sm:$0xff]
        %v557 = vld [vmem:[#allocation9 + $0x18] sm:$0xff]
        %v559 = vsel %vm423, 0.0, 0
        %561 = vmatprep.subr.mxu0 0.0
        %562 = vmatpush1.msra.mxu0 %v554
        %563 = vmatprep.subr.mxu0 0.0
        %564 = vmatpush1.msra.mxu0 %v555
        %565 = vmatprep.subr.mxu0 0.0
        %566 = vmatpush1.msra.mxu0 %v556
        %567 = vmatprep.subr.mxu0 0.0
        %568 = vmatpush1.msra.mxu0 %v557
        %569 = vmatprep.subr.mxu0 0.0
        %570 = vmatpush1.msra.mxu0 0.0
        %571 = vmatprep.subr.mxu0 0.0
        %572 = vmatpush1.msra.mxu0 0.0
        %573 = vmatprep.subr.mxu0 0.0
        %574 = vmatpush1.msra.mxu0 0.0
        %575 = vmatprep.subr.mxu0 0.0
        %576 = vmatpush1.msra.mxu0 0.0
        %577 = vmatprep.subr.mxu0 0.0
        %578 = vmatpush1.msra.mxu0 0.0
        %579 = vmatprep.subr.mxu0 0.0
        %580 = vmatpush1.msra.mxu0 0.0
        %581 = vmatprep.subr.mxu0 0.0
        %582 = vmatpush1.msra.mxu0 0.0
        %583 = vmatprep.subr.mxu0 0.0
        %584 = vmatpush1.msra.mxu0 0.0
        %585 = vmatprep.subr.mxu0 0.0
        %586 = vmatpush1.msra.mxu0 0.0
        %587 = vmatprep.subr.mxu0 0.0
        %588 = vmatpush1.msra.mxu0 0.0
        %589 = vmatprep.subr.mxu0 0.0
        %590 = vmatpush1.msra.mxu0 0.0
        %591 = vmatprep.subr.mxu0 0.0
        %592 = vmatpush1.msra.mxu0 0.0
        %593 = vmatprep.subr.mxu0 0.0
        %594 = vmatpush1.msra.mxu0 0.0
        %595 = vmatprep.subr.mxu0 0.0
        %596 = vmatpush1.msra.mxu0 0.0
        %597 = vmatprep.subr.mxu0 0.0
        %598 = vmatpush1.msra.mxu0 0.0
        %599 = vmatprep.subr.mxu0 0.0
        %600 = vmatpush1.msra.mxu0 0.0
        %601 = vmatprep.subr.mxu0 0.0
        %602 = vmatpush1.msra.mxu0 0.0
        %603 = vmatprep.subr.mxu0 0.0
        %604 = vmatpush1.msra.mxu0 0.0
        %605 = vmatprep.subr.mxu0 0.0
        %606 = vmatpush1.msra.mxu0 0.0
        %607 = vmatprep.subr.mxu0 0.0
        %608 = vmatpush1.msra.mxu0 0.0
        %609 = vmatprep.subr.mxu0 0.0
        %610 = vmatpush1.msra.mxu0 0.0
        %611 = vmatprep.subr.mxu0 0.0
        %612 = vmatpush1.msra.mxu0 0.0
        %613 = vmatprep.subr.mxu0 0.0
        %614 = vmatpush1.msra.mxu0 0.0
        %615 = vmatprep.subr.mxu0 0.0
        %616 = vmatpush1.msra.mxu0 0.0
        %617 = vmatprep.subr.mxu0 0.0
        %618 = vmatpush1.msra.mxu0 0.0
        %619 = vmatprep.subr.mxu0 0.0
        %620 = vmatpush1.msra.mxu0 0.0
        %621 = vmatprep.subr.mxu0 0.0
        %622 = vmatpush1.msra.mxu0 0.0
        %623 = vmatprep.subr.mxu0 0.0
        %624 = vmatpush1.msra.mxu0 0.0
        %625 = vmatprep.mubr.f32.mxu0 0.0
        %626 = vmatmul.mubr.f32.gmra.mrb[0].mxu0 %v559
        %v627 = vpop.f32.mrb[0].mxu0
        %v628 = vadd.f32 0.0, %v627
        %v629 = vpop.f32.mrb[0].mxu0
        %630 = vdwg.mxu0
        %v631 = vadd.f32 %v551, %v628
        %v632 = vxor.u32 %v631, 2147483648
        %v633 = vmul.f32 %v632, 1.442695
        %v634 = vpow.pop %v633
        %v635 = vadd.f32 %v634, 1.0
        %v636 = vrcp.pop %v635
        %v637 = vmul.f32 1.0, %v636
        %vm638 = vcmask 253952
        %639 = vst.msk [vmem:[%s273] sm:$0x1] %vm638, %v637
        %v641 = vsel %vm423, %v637, 0
        %643 = vmatprep.subr.mxu0 0.0
        %644 = vmatpush1.msra.mxu0 %v554
        %645 = vmatprep.subr.mxu0 0.0
        %646 = vmatpush1.msra.mxu0 %v555
        %647 = vmatprep.subr.mxu0 0.0
        %648 = vmatpush1.msra.mxu0 %v556
        %649 = vmatprep.subr.mxu0 0.0
        %650 = vmatpush1.msra.mxu0 %v557
        %651 = vmatprep.subr.mxu0 0.0
        %652 = vmatpush1.msra.mxu0 0.0
        %653 = vmatprep.subr.mxu0 0.0
        %654 = vmatpush1.msra.mxu0 0.0
        %655 = vmatprep.subr.mxu0 0.0
        %656 = vmatpush1.msra.mxu0 0.0
        %657 = vmatprep.subr.mxu0 0.0
        %658 = vmatpush1.msra.mxu0 0.0
        %659 = vmatprep.subr.mxu0 0.0
        %660 = vmatpush1.msra.mxu0 0.0
        %661 = vmatprep.subr.mxu0 0.0
        %662 = vmatpush1.msra.mxu0 0.0
        %663 = vmatprep.subr.mxu0 0.0
        %664 = vmatpush1.msra.mxu0 0.0
        %665 = vmatprep.subr.mxu0 0.0
        %666 = vmatpush1.msra.mxu0 0.0
        %667 = vmatprep.subr.mxu0 0.0
        %668 = vmatpush1.msra.mxu0 0.0
        %669 = vmatprep.subr.mxu0 0.0
        %670 = vmatpush1.msra.mxu0 0.0
        %671 = vmatprep.subr.mxu0 0.0
        %672 = vmatpush1.msra.mxu0 0.0
        %673 = vmatprep.subr.mxu0 0.0
        %674 = vmatpush1.msra.mxu0 0.0
        %675 = vmatprep.subr.mxu0 0.0
        %676 = vmatpush1.msra.mxu0 0.0
        %677 = vmatprep.subr.mxu0 0.0
        %678 = vmatpush1.msra.mxu0 0.0
        %679 = vmatprep.subr.mxu0 0.0
        %680 = vmatpush1.msra.mxu0 0.0
        %681 = vmatprep.subr.mxu0 0.0
        %682 = vmatpush1.msra.mxu0 0.0
        %683 = vmatprep.subr.mxu0 0.0
        %684 = vmatpush1.msra.mxu0 0.0
        %685 = vmatprep.subr.mxu0 0.0
        %686 = vmatpush1.msra.mxu0 0.0
        %687 = vmatprep.subr.mxu0 0.0
        %688 = vmatpush1.msra.mxu0 0.0
        %689 = vmatprep.subr.mxu0 0.0
        %690 = vmatpush1.msra.mxu0 0.0
        %691 = vmatprep.subr.mxu0 0.0
        %692 = vmatpush1.msra.mxu0 0.0
        %693 = vmatprep.subr.mxu0 0.0
        %694 = vmatpush1.msra.mxu0 0.0
        %695 = vmatprep.subr.mxu0 0.0
        %696 = vmatpush1.msra.mxu0 0.0
        %697 = vmatprep.subr.mxu0 0.0
        %698 = vmatpush1.msra.mxu0 0.0
        %699 = vmatprep.subr.mxu0 0.0
        %700 = vmatpush1.msra.mxu0 0.0
        %701 = vmatprep.subr.mxu0 0.0
        %702 = vmatpush1.msra.mxu0 0.0
        %703 = vmatprep.subr.mxu0 0.0
        %704 = vmatpush1.msra.mxu0 0.0
        %705 = vmatprep.subr.mxu0 0.0
        %706 = vmatpush1.msra.mxu0 0.0
        %707 = vmatprep.mubr.f32.mxu0 0.0
        %708 = vmatmul.mubr.f32.gmra.mrb[0].mxu0 %v641
        %v709 = vpop.f32.mrb[0].mxu0
        %v710 = vadd.f32 0.0, %v709
        %v711 = vpop.f32.mrb[0].mxu0
        %712 = vdwg.mxu0
        %v714 = vrot.slane %v710, 7
        %v716 = vadd.f32 %v551, %v714
        %v717 = vxor.u32 %v716, 2147483648
        %v718 = vmul.f32 %v717, 1.442695
        %v719 = vpow.pop %v718
        %v720 = vadd.f32 %v719, 1.0
        %v721 = vrcp.pop %v720
        %v722 = vmul.f32 1.0, %v721
        %vm723 = vcmask 254977
        %724 = vst.msk [vmem:[%s273] sm:$0x2] %vm723, %v722
        %v726 = vrot.slane %v722, 1
        %v727 = vsel %vm423, %v726, 0
        %729 = vmatprep.subr.mxu0 0.0
        %730 = vmatpush1.msra.mxu0 %v554
        %731 = vmatprep.subr.mxu0 0.0
        %732 = vmatpush1.msra.mxu0 %v555
        %733 = vmatprep.subr.mxu0 0.0
        %734 = vmatpush1.msra.mxu0 %v556
        %735 = vmatprep.subr.mxu0 0.0
        %736 = vmatpush1.msra.mxu0 %v557
        %737 = vmatprep.subr.mxu0 0.0
        %738 = vmatpush1.msra.mxu0 0.0
        %739 = vmatprep.subr.mxu0 0.0
        %740 = vmatpush1.msra.mxu0 0.0
        %741 = vmatprep.subr.mxu0 0.0
        %742 = vmatpush1.msra.mxu0 0.0
        %743 = vmatprep.subr.mxu0 0.0
        %744 = vmatpush1.msra.mxu0 0.0
        %745 = vmatprep.subr.mxu0 0.0
        %746 = vmatpush1.msra.mxu0 0.0
        %747 = vmatprep.subr.mxu0 0.0
        %748 = vmatpush1.msra.mxu0 0.0
        %749 = vmatprep.subr.mxu0 0.0
        %750 = vmatpush1.msra.mxu0 0.0
        %751 = vmatprep.subr.mxu0 0.0
        %752 = vmatpush1.msra.mxu0 0.0
        %753 = vmatprep.subr.mxu0 0.0
        %754 = vmatpush1.msra.mxu0 0.0
        %755 = vmatprep.subr.mxu0 0.0
        %756 = vmatpush1.msra.mxu0 0.0
        %757 = vmatprep.subr.mxu0 0.0
        %758 = vmatpush1.msra.mxu0 0.0
        %759 = vmatprep.subr.mxu0 0.0
        %760 = vmatpush1.msra.mxu0 0.0
        %761 = vmatprep.subr.mxu0 0.0
        %762 = vmatpush1.msra.mxu0 0.0
        %763 = vmatprep.subr.mxu0 0.0
        %764 = vmatpush1.msra.mxu0 0.0
        %765 = vmatprep.subr.mxu0 0.0
        %766 = vmatpush1.msra.mxu0 0.0
        %767 = vmatprep.subr.mxu0 0.0
        %768 = vmatpush1.msra.mxu0 0.0
        %769 = vmatprep.subr.mxu0 0.0
        %770 = vmatpush1.msra.mxu0 0.0
        %771 = vmatprep.subr.mxu0 0.0
        %772 = vmatpush1.msra.mxu0 0.0
        %773 = vmatprep.subr.mxu0 0.0
        %774 = vmatpush1.msra.mxu0 0.0
        %775 = vmatprep.subr.mxu0 0.0
        %776 = vmatpush1.msra.mxu0 0.0
        %777 = vmatprep.subr.mxu0 0.0
        %778 = vmatpush1.msra.mxu0 0.0
        %779 = vmatprep.subr.mxu0 0.0
        %780 = vmatpush1.msra.mxu0 0.0
        %781 = vmatprep.subr.mxu0 0.0
        %782 = vmatpush1.msra.mxu0 0.0
        %783 = vmatprep.subr.mxu0 0.0
        %784 = vmatpush1.msra.mxu0 0.0
        %785 = vmatprep.subr.mxu0 0.0
        %786 = vmatpush1.msra.mxu0 0.0
        %787 = vmatprep.subr.mxu0 0.0
        %788 = vmatpush1.msra.mxu0 0.0
        %789 = vmatprep.subr.mxu0 0.0
        %790 = vmatpush1.msra.mxu0 0.0
        %791 = vmatprep.subr.mxu0 0.0
        %792 = vmatpush1.msra.mxu0 0.0
        %793 = vmatprep.mubr.f32.mxu0 0.0
        %794 = vmatmul.mubr.f32.gmra.mrb[0].mxu0 %v727
        %v795 = vpop.f32.mrb[0].mxu0
        %v796 = vadd.f32 0.0, %v795
        %v797 = vpop.f32.mrb[0].mxu0
        %798 = vdwg.mxu0
        %v800 = vrot.slane %v796, 6
        %v802 = vadd.f32 %v551, %v800
        %v803 = vxor.u32 %v802, 2147483648
        %v804 = vmul.f32 %v803, 1.442695
        %v805 = vpow.pop %v804
        %v806 = vadd.f32 %v805, 1.0
        %v807 = vrcp.pop %v806
        %v808 = vmul.f32 1.0, %v807
        %vm809 = vcmask 256002
        %810 = vst.msk [vmem:[%s273] sm:$0x4] %vm809, %v808
        %v812 = vrot.slane %v808, 2
        %v813 = vsel %vm423, %v812, 0
        %815 = vmatprep.subr.mxu0 0.0
        %816 = vmatpush1.msra.mxu0 %v554
        %817 = vmatprep.subr.mxu0 0.0
        %818 = vmatpush1.msra.mxu0 %v555
        %819 = vmatprep.subr.mxu0 0.0
        %820 = vmatpush1.msra.mxu0 %v556
        %821 = vmatprep.subr.mxu0 0.0
        %822 = vmatpush1.msra.mxu0 %v557
        %823 = vmatprep.subr.mxu0 0.0
        %824 = vmatpush1.msra.mxu0 0.0
        %825 = vmatprep.subr.mxu0 0.0
        %826 = vmatpush1.msra.mxu0 0.0
        %827 = vmatprep.subr.mxu0 0.0
        %828 = vmatpush1.msra.mxu0 0.0
        %829 = vmatprep.subr.mxu0 0.0
        %830 = vmatpush1.msra.mxu0 0.0
        %831 = vmatprep.subr.mxu0 0.0
        %832 = vmatpush1.msra.mxu0 0.0
        %833 = vmatprep.subr.mxu0 0.0
        %834 = vmatpush1.msra.mxu0 0.0
        %835 = vmatprep.subr.mxu0 0.0
        %836 = vmatpush1.msra.mxu0 0.0
        %837 = vmatprep.subr.mxu0 0.0
        %838 = vmatpush1.msra.mxu0 0.0
        %839 = vmatprep.subr.mxu0 0.0
        %840 = vmatpush1.msra.mxu0 0.0
        %841 = vmatprep.subr.mxu0 0.0
        %842 = vmatpush1.msra.mxu0 0.0
        %843 = vmatprep.subr.mxu0 0.0
        %844 = vmatpush1.msra.mxu0 0.0
        %845 = vmatprep.subr.mxu0 0.0
        %846 = vmatpush1.msra.mxu0 0.0
        %847 = vmatprep.subr.mxu0 0.0
        %848 = vmatpush1.msra.mxu0 0.0
        %849 = vmatprep.subr.mxu0 0.0
        %850 = vmatpush1.msra.mxu0 0.0
        %851 = vmatprep.subr.mxu0 0.0
        %852 = vmatpush1.msra.mxu0 0.0
        %853 = vmatprep.subr.mxu0 0.0
        %854 = vmatpush1.msra.mxu0 0.0
        %855 = vmatprep.subr.mxu0 0.0
        %856 = vmatpush1.msra.mxu0 0.0
        %857 = vmatprep.subr.mxu0 0.0
        %858 = vmatpush1.msra.mxu0 0.0
        %859 = vmatprep.subr.mxu0 0.0
        %860 = vmatpush1.msra.mxu0 0.0
        %861 = vmatprep.subr.mxu0 0.0
        %862 = vmatpush1.msra.mxu0 0.0
        %863 = vmatprep.subr.mxu0 0.0
        %864 = vmatpush1.msra.mxu0 0.0
        %865 = vmatprep.subr.mxu0 0.0
        %866 = vmatpush1.msra.mxu0 0.0
        %867 = vmatprep.subr.mxu0 0.0
        %868 = vmatpush1.msra.mxu0 0.0
        %869 = vmatprep.subr.mxu0 0.0
        %870 = vmatpush1.msra.mxu0 0.0
        %871 = vmatprep.subr.mxu0 0.0
        %872 = vmatpush1.msra.mxu0 0.0
        %873 = vmatprep.subr.mxu0 0.0
        %874 = vmatpush1.msra.mxu0 0.0
        %875 = vmatprep.subr.mxu0 0.0
        %876 = vmatpush1.msra.mxu0 0.0
        %877 = vmatprep.subr.mxu0 0.0
        %878 = vmatpush1.msra.mxu0 0.0
        %879 = vmatprep.mubr.f32.mxu0 0.0
        %880 = vmatmul.mubr.f32.gmra.mrb[0].mxu0 %v813
        %v881 = vpop.f32.mrb[0].mxu0
        %v882 = vadd.f32 0.0, %v881
        %v883 = vpop.f32.mrb[0].mxu0
        %884 = vdwg.mxu0
        %v886 = vrot.slane %v882, 5
        %v888 = vadd.f32 %v551, %v886
        %v889 = vxor.u32 %v888, 2147483648
        %v890 = vmul.f32 %v889, 1.442695
        %v891 = vpow.pop %v890
        %v892 = vadd.f32 %v891, 1.0
        %v893 = vrcp.pop %v892
        %v894 = vmul.f32 1.0, %v893
        %vm895 = vcmask 257027
        %896 = vst.msk [vmem:[%s273] sm:$0x8] %vm895, %v894
        %v898 = vrot.slane %v894, 3
        %v899 = vsel %vm423, %v898, 0
        %901 = vmatprep.subr.mxu0 0.0
        %902 = vmatpush1.msra.mxu0 %v554
        %903 = vmatprep.subr.mxu0 0.0
        %904 = vmatpush1.msra.mxu0 %v555
        %905 = vmatprep.subr.mxu0 0.0
        %906 = vmatpush1.msra.mxu0 %v556
        %907 = vmatprep.subr.mxu0 0.0
        %908 = vmatpush1.msra.mxu0 %v557
        %909 = vmatprep.subr.mxu0 0.0
        %910 = vmatpush1.msra.mxu0 0.0
        %911 = vmatprep.subr.mxu0 0.0
        %912 = vmatpush1.msra.mxu0 0.0
        %913 = vmatprep.subr.mxu0 0.0
        %914 = vmatpush1.msra.mxu0 0.0
        %915 = vmatprep.subr.mxu0 0.0
        %916 = vmatpush1.msra.mxu0 0.0
        %917 = vmatprep.subr.mxu0 0.0
        %918 = vmatpush1.msra.mxu0 0.0
        %919 = vmatprep.subr.mxu0 0.0
        %920 = vmatpush1.msra.mxu0 0.0
        %921 = vmatprep.subr.mxu0 0.0
        %922 = vmatpush1.msra.mxu0 0.0
        %923 = vmatprep.subr.mxu0 0.0
        %924 = vmatpush1.msra.mxu0 0.0
        %925 = vmatprep.subr.mxu0 0.0
        %926 = vmatpush1.msra.mxu0 0.0
        %927 = vmatprep.subr.mxu0 0.0
        %928 = vmatpush1.msra.mxu0 0.0
        %929 = vmatprep.subr.mxu0 0.0
        %930 = vmatpush1.msra.mxu0 0.0
        %931 = vmatprep.subr.mxu0 0.0
        %932 = vmatpush1.msra.mxu0 0.0
        %933 = vmatprep.subr.mxu0 0.0
        %934 = vmatpush1.msra.mxu0 0.0
        %935 = vmatprep.subr.mxu0 0.0
        %936 = vmatpush1.msra.mxu0 0.0
        %937 = vmatprep.subr.mxu0 0.0
        %938 = vmatpush1.msra.mxu0 0.0
        %939 = vmatprep.subr.mxu0 0.0
        %940 = vmatpush1.msra.mxu0 0.0
        %941 = vmatprep.subr.mxu0 0.0
        %942 = vmatpush1.msra.mxu0 0.0
        %943 = vmatprep.subr.mxu0 0.0
        %944 = vmatpush1.msra.mxu0 0.0
        %945 = vmatprep.subr.mxu0 0.0
        %946 = vmatpush1.msra.mxu0 0.0
        %947 = vmatprep.subr.mxu0 0.0
        %948 = vmatpush1.msra.mxu0 0.0
        %949 = vmatprep.subr.mxu0 0.0
        %950 = vmatpush1.msra.mxu0 0.0
        %951 = vmatprep.subr.mxu0 0.0
        %952 = vmatpush1.msra.mxu0 0.0
        %953 = vmatprep.subr.mxu0 0.0
        %954 = vmatpush1.msra.mxu0 0.0
        %955 = vmatprep.subr.mxu0 0.0
        %956 = vmatpush1.msra.mxu0 0.0
        %957 = vmatprep.subr.mxu0 0.0
        %958 = vmatpush1.msra.mxu0 0.0
        %959 = vmatprep.subr.mxu0 0.0
        %960 = vmatpush1.msra.mxu0 0.0
        %961 = vmatprep.subr.mxu0 0.0
        %962 = vmatpush1.msra.mxu0 0.0
        %963 = vmatprep.subr.mxu0 0.0
        %964 = vmatpush1.msra.mxu0 0.0
        %965 = vmatprep.mubr.f32.mxu0 0.0
        %966 = vmatmul.mubr.f32.gmra.mrb[0].mxu0 %v899
        %v967 = vpop.f32.mrb[0].mxu0
        %v968 = vadd.f32 0.0, %v967
        %v969 = vpop.f32.mrb[0].mxu0
        %970 = vdwg.mxu0
        %v972 = vrot.slane %v968, 4
        %v974 = vadd.f32 %v551, %v972
        %v975 = vxor.u32 %v974, 2147483648
        %v976 = vmul.f32 %v975, 1.442695
        %v977 = vpow.pop %v976
        %v978 = vadd.f32 %v977, 1.0
        %v979 = vrcp.pop %v978
        %v980 = vmul.f32 1.0, %v979
        %vm981 = vcmask 258052
        %982 = vst.msk [vmem:[%s273] sm:$0x10] %vm981, %v980
        %v984 = vrot.slane %v980, 4
        %v985 = vsel %vm423, %v984, 0
        %987 = vmatprep.subr.mxu0 0.0
        %988 = vmatpush1.msra.mxu0 %v554
        %989 = vmatprep.subr.mxu0 0.0
        %990 = vmatpush1.msra.mxu0 %v555
        %991 = vmatprep.subr.mxu0 0.0
        %992 = vmatpush1.msra.mxu0 %v556
        %993 = vmatprep.subr.mxu0 0.0
        %994 = vmatpush1.msra.mxu0 %v557
        %995 = vmatprep.subr.mxu0 0.0
        %996 = vmatpush1.msra.mxu0 0.0
        %997 = vmatprep.subr.mxu0 0.0
        %998 = vmatpush1.msra.mxu0 0.0
        %999 = vmatprep.subr.mxu0 0.0
        %1000 = vmatpush1.msra.mxu0 0.0
        %1001 = vmatprep.subr.mxu0 0.0
        %1002 = vmatpush1.msra.mxu0 0.0
        %1003 = vmatprep.subr.mxu0 0.0
        %1004 = vmatpush1.msra.mxu0 0.0
        %1005 = vmatprep.subr.mxu0 0.0
        %1006 = vmatpush1.msra.mxu0 0.0
        %1007 = vmatprep.subr.mxu0 0.0
        %1008 = vmatpush1.msra.mxu0 0.0
        %1009 = vmatprep.subr.mxu0 0.0
        %1010 = vmatpush1.msra.mxu0 0.0
        %1011 = vmatprep.subr.mxu0 0.0
        %1012 = vmatpush1.msra.mxu0 0.0
        %1013 = vmatprep.subr.mxu0 0.0
        %1014 = vmatpush1.msra.mxu0 0.0
        %1015 = vmatprep.subr.mxu0 0.0
        %1016 = vmatpush1.msra.mxu0 0.0
        %1017 = vmatprep.subr.mxu0 0.0
        %1018 = vmatpush1.msra.mxu0 0.0
        %1019 = vmatprep.subr.mxu0 0.0
        %1020 = vmatpush1.msra.mxu0 0.0
        %1021 = vmatprep.subr.mxu0 0.0
        %1022 = vmatpush1.msra.mxu0 0.0
        %1023 = vmatprep.subr.mxu0 0.0
        %1024 = vmatpush1.msra.mxu0 0.0
        %1025 = vmatprep.subr.mxu0 0.0
        %1026 = vmatpush1.msra.mxu0 0.0
        %1027 = vmatprep.subr.mxu0 0.0
        %1028 = vmatpush1.msra.mxu0 0.0
        %1029 = vmatprep.subr.mxu0 0.0
        %1030 = vmatpush1.msra.mxu0 0.0
        %1031 = vmatprep.subr.mxu0 0.0
        %1032 = vmatpush1.msra.mxu0 0.0
        %1033 = vmatprep.subr.mxu0 0.0
        %1034 = vmatpush1.msra.mxu0 0.0
        %1035 = vmatprep.subr.mxu0 0.0
        %1036 = vmatpush1.msra.mxu0 0.0
        %1037 = vmatprep.subr.mxu0 0.0
        %1038 = vmatpush1.msra.mxu0 0.0
        %1039 = vmatprep.subr.mxu0 0.0
        %1040 = vmatpush1.msra.mxu0 0.0
        %1041 = vmatprep.subr.mxu0 0.0
        %1042 = vmatpush1.msra.mxu0 0.0
        %1043 = vmatprep.subr.mxu0 0.0
        %1044 = vmatpush1.msra.mxu0 0.0
        %1045 = vmatprep.subr.mxu0 0.0
        %1046 = vmatpush1.msra.mxu0 0.0
        %1047 = vmatprep.subr.mxu0 0.0
        %1048 = vmatpush1.msra.mxu0 0.0
        %1049 = vmatprep.subr.mxu0 0.0
        %1050 = vmatpush1.msra.mxu0 0.0
        %1051 = vmatprep.mubr.f32.mxu0 0.0
        %1052 = vmatmul.mubr.f32.gmra.mrb[0].mxu0 %v985
        %v1053 = vpop.f32.mrb[0].mxu0
        %v1054 = vadd.f32 0.0, %v1053
        %v1055 = vpop.f32.mrb[0].mxu0
        %1056 = vdwg.mxu0
        %v1058 = vrot.slane %v1054, 3
        %v1060 = vadd.f32 %v551, %v1058
        %v1061 = vxor.u32 %v1060, 2147483648
        %v1062 = vmul.f32 %v1061, 1.442695
        %v1063 = vpow.pop %v1062
        %v1064 = vadd.f32 %v1063, 1.0
        %v1065 = vrcp.pop %v1064
        %v1066 = vmul.f32 1.0, %v1065
        %vm1067 = vcmask 259077
        %1068 = vst.msk [vmem:[%s273] sm:$0x20] %vm1067, %v1066
        %v1070 = vrot.slane %v1066, 5
        %v1071 = vsel %vm423, %v1070, 0
        %1073 = vmatprep.subr.mxu0 0.0
        %1074 = vmatpush1.msra.mxu0 %v554
        %1075 = vmatprep.subr.mxu0 0.0
        %1076 = vmatpush1.msra.mxu0 %v555
        %1077 = vmatprep.subr.mxu0 0.0
        %1078 = vmatpush1.msra.mxu0 %v556
        %1079 = vmatprep.subr.mxu0 0.0
        %1080 = vmatpush1.msra.mxu0 %v557
        %1081 = vmatprep.subr.mxu0 0.0
        %1082 = vmatpush1.msra.mxu0 0.0
        %1083 = vmatprep.subr.mxu0 0.0
        %1084 = vmatpush1.msra.mxu0 0.0
        %1085 = vmatprep.subr.mxu0 0.0
        %1086 = vmatpush1.msra.mxu0 0.0
        %1087 = vmatprep.subr.mxu0 0.0
        %1088 = vmatpush1.msra.mxu0 0.0
        %1089 = vmatprep.subr.mxu0 0.0
        %1090 = vmatpush1.msra.mxu0 0.0
        %1091 = vmatprep.subr.mxu0 0.0
        %1092 = vmatpush1.msra.mxu0 0.0
        %1093 = vmatprep.subr.mxu0 0.0
        %1094 = vmatpush1.msra.mxu0 0.0
        %1095 = vmatprep.subr.mxu0 0.0
        %1096 = vmatpush1.msra.mxu0 0.0
        %1097 = vmatprep.subr.mxu0 0.0
        %1098 = vmatpush1.msra.mxu0 0.0
        %1099 = vmatprep.subr.mxu0 0.0
        %1100 = vmatpush1.msra.mxu0 0.0
        %1101 = vmatprep.subr.mxu0 0.0
        %1102 = vmatpush1.msra.mxu0 0.0
        %1103 = vmatprep.subr.mxu0 0.0
        %1104 = vmatpush1.msra.mxu0 0.0
        %1105 = vmatprep.subr.mxu0 0.0
        %1106 = vmatpush1.msra.mxu0 0.0
        %1107 = vmatprep.subr.mxu0 0.0
        %1108 = vmatpush1.msra.mxu0 0.0
        %1109 = vmatprep.subr.mxu0 0.0
        %1110 = vmatpush1.msra.mxu0 0.0
        %1111 = vmatprep.subr.mxu0 0.0
        %1112 = vmatpush1.msra.mxu0 0.0
        %1113 = vmatprep.subr.mxu0 0.0
        %1114 = vmatpush1.msra.mxu0 0.0
        %1115 = vmatprep.subr.mxu0 0.0
        %1116 = vmatpush1.msra.mxu0 0.0
        %1117 = vmatprep.subr.mxu0 0.0
        %1118 = vmatpush1.msra.mxu0 0.0
        %1119 = vmatprep.subr.mxu0 0.0
        %1120 = vmatpush1.msra.mxu0 0.0
        %1121 = vmatprep.subr.mxu0 0.0
        %1122 = vmatpush1.msra.mxu0 0.0
        %1123 = vmatprep.subr.mxu0 0.0
        %1124 = vmatpush1.msra.mxu0 0.0
        %1125 = vmatprep.subr.mxu0 0.0
        %1126 = vmatpush1.msra.mxu0 0.0
        %1127 = vmatprep.subr.mxu0 0.0
        %1128 = vmatpush1.msra.mxu0 0.0
        %1129 = vmatprep.subr.mxu0 0.0
        %1130 = vmatpush1.msra.mxu0 0.0
        %1131 = vmatprep.subr.mxu0 0.0
        %1132 = vmatpush1.msra.mxu0 0.0
        %1133 = vmatprep.subr.mxu0 0.0
        %1134 = vmatpush1.msra.mxu0 0.0
        %1135 = vmatprep.subr.mxu0 0.0
        %1136 = vmatpush1.msra.mxu0 0.0
        %1137 = vmatprep.mubr.f32.mxu0 0.0
        %1138 = vmatmul.mubr.f32.gmra.mrb[0].mxu0 %v1071
        %v1139 = vpop.f32.mrb[0].mxu0
        %v1140 = vadd.f32 0.0, %v1139
        %v1141 = vpop.f32.mrb[0].mxu0
        %1142 = vdwg.mxu0
        %v1144 = vrot.slane %v1140, 2
        %v1146 = vadd.f32 %v551, %v1144
        %v1147 = vxor.u32 %v1146, 2147483648
        %v1148 = vmul.f32 %v1147, 1.442695
        %v1149 = vpow.pop %v1148
        %v1150 = vadd.f32 %v1149, 1.0
        %v1151 = vrcp.pop %v1150
        %v1152 = vmul.f32 1.0, %v1151
        %vm1153 = vcmask 260102
        %1154 = vst.msk [vmem:[%s273] sm:$0x40] %vm1153, %v1152
        %v1156 = vrot.slane %v1152, 6
        %v1157 = vsel %vm423, %v1156, 0
        %1159 = vmatprep.subr.mxu0 0.0
        %1160 = vmatpush1.msra.mxu0 %v554
        %1161 = vmatprep.subr.mxu0 0.0
        %1162 = vmatpush1.msra.mxu0 %v555
        %1163 = vmatprep.subr.mxu0 0.0
        %1164 = vmatpush1.msra.mxu0 %v556
        %1165 = vmatprep.subr.mxu0 0.0
        %1166 = vmatpush1.msra.mxu0 %v557
        %1167 = vmatprep.subr.mxu0 0.0
        %1168 = vmatpush1.msra.mxu0 0.0
        %1169 = vmatprep.subr.mxu0 0.0
        %1170 = vmatpush1.msra.mxu0 0.0
        %1171 = vmatprep.subr.mxu0 0.0
        %1172 = vmatpush1.msra.mxu0 0.0
        %1173 = vmatprep.subr.mxu0 0.0
        %1174 = vmatpush1.msra.mxu0 0.0
        %1175 = vmatprep.subr.mxu0 0.0
        %1176 = vmatpush1.msra.mxu0 0.0
        %1177 = vmatprep.subr.mxu0 0.0
        %1178 = vmatpush1.msra.mxu0 0.0
        %1179 = vmatprep.subr.mxu0 0.0
        %1180 = vmatpush1.msra.mxu0 0.0
        %1181 = vmatprep.subr.mxu0 0.0
        %1182 = vmatpush1.msra.mxu0 0.0
        %1183 = vmatprep.subr.mxu0 0.0
        %1184 = vmatpush1.msra.mxu0 0.0
        %1185 = vmatprep.subr.mxu0 0.0
        %1186 = vmatpush1.msra.mxu0 0.0
        %1187 = vmatprep.subr.mxu0 0.0
        %1188 = vmatpush1.msra.mxu0 0.0
        %1189 = vmatprep.subr.mxu0 0.0
        %1190 = vmatpush1.msra.mxu0 0.0
        %1191 = vmatprep.subr.mxu0 0.0
        %1192 = vmatpush1.msra.mxu0 0.0
        %1193 = vmatprep.subr.mxu0 0.0
        %1194 = vmatpush1.msra.mxu0 0.0
        %1195 = vmatprep.subr.mxu0 0.0
        %1196 = vmatpush1.msra.mxu0 0.0
        %1197 = vmatprep.subr.mxu0 0.0
        %1198 = vmatpush1.msra.mxu0 0.0
        %1199 = vmatprep.subr.mxu0 0.0
        %1200 = vmatpush1.msra.mxu0 0.0
        %1201 = vmatprep.subr.mxu0 0.0
        %1202 = vmatpush1.msra.mxu0 0.0
        %1203 = vmatprep.subr.mxu0 0.0
        %1204 = vmatpush1.msra.mxu0 0.0
        %1205 = vmatprep.subr.mxu0 0.0
        %1206 = vmatpush1.msra.mxu0 0.0
        %1207 = vmatprep.subr.mxu0 0.0
        %1208 = vmatpush1.msra.mxu0 0.0
        %1209 = vmatprep.subr.mxu0 0.0
        %1210 = vmatpush1.msra.mxu0 0.0
        %1211 = vmatprep.subr.mxu0 0.0
        %1212 = vmatpush1.msra.mxu0 0.0
        %1213 = vmatprep.subr.mxu0 0.0
        %1214 = vmatpush1.msra.mxu0 0.0
        %1215 = vmatprep.subr.mxu0 0.0
        %1216 = vmatpush1.msra.mxu0 0.0
        %1217 = vmatprep.subr.mxu0 0.0
        %1218 = vmatpush1.msra.mxu0 0.0
        %1219 = vmatprep.subr.mxu0 0.0
        %1220 = vmatpush1.msra.mxu0 0.0
        %1221 = vmatprep.subr.mxu0 0.0
        %1222 = vmatpush1.msra.mxu0 0.0
        %1223 = vmatprep.mubr.f32.mxu0 0.0
        %1224 = vmatmul.mubr.f32.gmra.mrb[0].mxu0 %v1157
        %v1225 = vpop.f32.mrb[0].mxu0
        %v1226 = vadd.f32 0.0, %v1225
        %v1227 = vpop.f32.mrb[0].mxu0
        %1228 = vdwg.mxu0
        %v1230 = vrot.slane %v1226, 1
        %v1232 = vadd.f32 %v551, %v1230
        %v1233 = vxor.u32 %v1232, 2147483648
        %v1234 = vmul.f32 %v1233, 1.442695
        %v1235 = vpow.pop %v1234
        %v1236 = vadd.f32 %v1235, 1.0
        %v1237 = vrcp.pop %v1236
        %v1238 = vmul.f32 1.0, %v1237
        %vm1239 = vcmask 261127
        %1240 = vst.msk [vmem:[%s273] sm:$0x80] %vm1239, %v1238
        %s1241 = sand.u32 %s124, 1
        %s1242 = scalar_lea.sflag [#allocation5], %s1241
        %s1243 = sand.u32 %s124, 1
        %s1244 = smul.addr %s1243, 8
        %s1245 = scalar_lea.vmem [#allocation10], %s1244
        // Predicated region
        $region53: #{tpu_custom_call.1} parent=35 // pred_check
          %p1246 = pneg %p134
        $region54: #{tpu_custom_call.1} parent=35 // pred_check_branch
          %1248 = sbr.rel (%p1246) target = $region56
        $region55: #{tpu_custom_call.1} parent=35 // pred_region
          %s1250 = ssub.s32 128, 128
          %1251 = vsyncadd %s1242, %s1250
          %s1252 = smul.addr %s22, 128
          %s1253 = scalar_lea.hbm %s4, %s1252
          %s1255 = sshll.u32 %s1245, 4
          %s1256 = int_to_ptr.vmem [resolvable:$true] %s1255
          %1258 = dma.vmem_to_hbm [thread:$0]  %s1256, 128, %s1253, %s1242
        $region56: #{tpu_custom_call.1} parent=35 // pred_fallthru
          _
      $region36: #{tpu_custom_call.1} parent=5 // pred_fallthru
        _
      %p1259 = scmp.le.s32.totalorder 2, %s17
      // Predicated region
      $region57: #{tpu_custom_call.1} parent=5 // pred_check
        %p1260 = pneg %p1259
      $region58: #{tpu_custom_call.1} parent=5 // pred_check_branch
        %1262 = sbr.rel (%p1260) target = $region60
      $region59: #{tpu_custom_call.1} parent=5 // pred_region
        %s1263 = ssub.s32 %s17, 2
        // Predicated region
        $region61: #{tpu_custom_call.1} parent=59 // pred_check
          %p1264 = pneg %p140
        $region62: #{tpu_custom_call.1} parent=59 // pred_check_branch
          %1266 = sbr.rel (%p1264) target = $region64
        $region63: #{tpu_custom_call.1} parent=59 // pred_region
          %s1267 = sand.u32 %s125, 1
          %s1268 = scalar_lea.sflag [#allocation5], %s1267
          %s1269 = sand.u32 %s125, 1
          %s1270 = smul.addr %s1269, 8
          %s1271 = scalar_lea.vmem [#allocation10], %s1270
          %1272 = dma.done %s1268, 128
        $region64: #{tpu_custom_call.1} parent=59 // pred_fallthru
          _
      $region60: #{tpu_custom_call.1} parent=5 // pred_fallthru
        _
    $region6: #{tpu_custom_call.1} parent=1 // loop_footer
      %s21 = sadd.s32 1, %s17
    $region7: #{tpu_custom_call.1} parent=1 // loop_footer_branch
      %16 = sbr.rel target = $region3
    $region8: #{tpu_custom_call.1} parent=1 // loop_exit
      _
    %1273 = vsyncpa [#allocation4], 1
    %s1274 = scalar_lea.sflag [#allocation4], 1
    %1275 = vsyncpa %s1274, 1
    %1276 = vsyncpa [#allocation7], 1
    %1277 = vsyncpa [#allocation5], 1
    %s1278 = scalar_lea.sflag [#allocation5], 1
    %1279 = vsyncpa %s1278, 1

</llo_original>
